<compile_context>
chip_gen: v5e
topology: v5e:2x2
jax: 0.10.0
libtpu: 0.0.40
codegen_flags: <defaults>
</compile_context>

<pallas_src>
import functools
import math

import jax
import jax.numpy as jnp
from jax.experimental import pallas as pl
from jax.experimental.pallas import tpu as pltpu

# ----- small BERT config (structure of bert-base, tiny sizes) -----
VOCAB = 100
MAX_POS = 32
TYPE_VOCAB = 2
HIDDEN = 32
N_HEADS = 2
HEAD_DIM = HIDDEN // N_HEADS
INTERMEDIATE = 64
N_LAYERS = 2
N_CLASSES = 10
LN_EPS = 1e-12

_VMEM = pl.BlockSpec(memory_space=pltpu.MemorySpace.VMEM)


# ----------------------------------------------------------- in-kernel ops --
def _ln(x, g, b, eps=LN_EPS):
    mu = jnp.mean(x, axis=-1, keepdims=True)
    var = jnp.mean((x - mu) ** 2, axis=-1, keepdims=True)
    return (x - mu) * jax.lax.rsqrt(var + eps) * g + b


def _gelu(y):
    # TODO(synk): HF BERT uses exact erf-GELU; tanh approximation used here.
    c = 0.7978845608028654
    return 0.5 * y * (1.0 + jnp.tanh(c * (y + 0.044715 * y * y * y)))


# ------------------------------------------------------- embedding layernorm
def _emb_ln_kernel(x_ref, g_ref, b_ref, o_ref):
    x = x_ref[...].astype(jnp.float32)
    o_ref[...] = _ln(x, g_ref[...], b_ref[...]).astype(o_ref.dtype)


def emb_layernorm(x, g, b):
    return pl.pallas_call(
        _emb_ln_kernel,
        out_shape=jax.ShapeDtypeStruct(x.shape, jnp.float32),
        in_specs=[_VMEM, _VMEM, _VMEM],
        out_specs=_VMEM,
    )(x, g, b)


# ------------------------------------------------ fused transformer layer --
def _layer_kernel(x_ref, mask_ref, wqkv_ref, bqkv_ref, wo_ref, bo_ref,
                  ln1g_ref, ln1b_ref, w1_ref, b1_ref, w2_ref, b2_ref,
                  ln2g_ref, ln2b_ref, o_ref, *, batch, seq, n_heads, head_dim):
    hidden = n_heads * head_dim
    scale = 1.0 / math.sqrt(head_dim)

    x = x_ref[...].astype(jnp.float32)                          # (M=B*S, H)

    # --- fused QKV projection: one (M,H) x (H,3H) matmul ---
    qkv = jnp.dot(x, wqkv_ref[...],
                  preferred_element_type=jnp.float32) + bqkv_ref[...]
    q = qkv[:, 0 * hidden:1 * hidden] * scale                   # scale folded into Q
    k = qkv[:, 1 * hidden:2 * hidden]
    v = qkv[:, 2 * hidden:3 * hidden]

    mask = mask_ref[...]                                        # (B, S) additive 0/-1e9

    # --- attention, head split done in-kernel via static slices ---
    ctx_rows = []
    for b in range(batch):
        r0 = b * seq
        head_ctx = []
        for h in range(n_heads):
            c0 = h * head_dim
            qb = q[r0:r0 + seq, c0:c0 + head_dim]               # (S, Dh)
            kb = k[r0:r0 + seq, c0:c0 + head_dim]
            vb = v[r0:r0 + seq, c0:c0 + head_dim]
            # scores = qb @ kb^T without materializing a transpose.
            s = jax.lax.dot_general(qb, kb, (((1,), (1,)), ((), ())),
                                    preferred_element_type=jnp.float32)
            s = s + mask[b:b + 1, :]                            # broadcast over rows
            s = s - jnp.max(s, axis=-1, keepdims=True)
            p = jnp.exp(s)
            p = p * pl.reciprocal(jnp.sum(p, axis=-1, keepdims=True), approx=True)
            head_ctx.append(jnp.dot(p, vb, preferred_element_type=jnp.float32))
        ctx_rows.append(jnp.concatenate(head_ctx, axis=-1))     # (S, H)
    ctx = jnp.concatenate(ctx_rows, axis=0)                     # (M, H)

    # --- output projection + residual + LN ---
    attn_out = jnp.dot(ctx, wo_ref[...],
                       preferred_element_type=jnp.float32) + bo_ref[...]
    h1 = _ln(attn_out + x, ln1g_ref[...], ln1b_ref[...])

    # --- FFN + residual + LN ---
    inter = _gelu(jnp.dot(h1, w1_ref[...],
                          preferred_element_type=jnp.float32) + b1_ref[...])
    ffn = jnp.dot(inter, w2_ref[...],
                  preferred_element_type=jnp.float32) + b2_ref[...]
    o_ref[...] = _ln(ffn + h1, ln2g_ref[...], ln2b_ref[...]).astype(o_ref.dtype)


def transformer_layer(h, add_mask, layer, *, batch, seq):
    m, hidden = h.shape
    kern = functools.partial(_layer_kernel, batch=batch, seq=seq,
                             n_heads=N_HEADS, head_dim=HEAD_DIM)
    return pl.pallas_call(
        kern,
        out_shape=jax.ShapeDtypeStruct((m, hidden), jnp.float32),
        in_specs=[_VMEM] * 14,
        out_specs=_VMEM,
    )(h, add_mask,
      layer["wqkv"], layer["bqkv"].reshape(1, -1),
      layer["wo"], layer["bo"].reshape(1, -1),
      layer["ln1_g"], layer["ln1_b"],
      layer["w1"], layer["b1"].reshape(1, -1),
      layer["w2"], layer["b2"].reshape(1, -1),
      layer["ln2_g"], layer["ln2_b"])


# ------------------------------------------- fused pooler + classifier head
def _head_kernel(h_ref, pw_ref, pb_ref, cw_ref, cb_ref, o_ref, *, batch, seq):
    h = h_ref[...].astype(jnp.float32)                          # (B*S, H)
    # CLS token rows (position 0 of every sequence), selected in-kernel.
    cls = jnp.concatenate([h[b * seq:b * seq + 1, :] for b in range(batch)], axis=0)
    pooled = jnp.tanh(jnp.dot(cls, pw_ref[...],
                              preferred_element_type=jnp.float32) + pb_ref[...])
    logits = jnp.dot(pooled, cw_ref[...],
                     preferred_element_type=jnp.float32) + cb_ref[...]
    o_ref[...] = logits.astype(o_ref.dtype)


def pooler_classifier(h, params, *, batch, seq):
    kern = functools.partial(_head_kernel, batch=batch, seq=seq)
    return pl.pallas_call(
        kern,
        out_shape=jax.ShapeDtypeStruct((batch, N_CLASSES), jnp.float32),
        in_specs=[_VMEM] * 5,
        out_specs=_VMEM,
    )(h, params["pooler_w"], params["pooler_b"].reshape(1, -1),
      params["cls_w"], params["cls_b"].reshape(1, -1))


# --------------------------------------------------------------- params ----
def init_params(key):
    keys = iter(jax.random.split(key, 256))

    def nrm(shape, std=0.02):
        return (std * jax.random.normal(next(keys), shape)).astype(jnp.float32)

    params = {
        "word_emb": nrm((VOCAB, HIDDEN)),
        "pos_emb": nrm((MAX_POS, HIDDEN)),
        "type_emb": nrm((TYPE_VOCAB, HIDDEN)),
        "emb_ln_g": jnp.ones((1, HIDDEN), jnp.float32),
        "emb_ln_b": jnp.zeros((1, HIDDEN), jnp.float32),
        "layers": [],
        "pooler_w": nrm((HIDDEN, HIDDEN)),
        "pooler_b": jnp.zeros((HIDDEN,), jnp.float32),
        "cls_w": nrm((HIDDEN, N_CLASSES)),
        "cls_b": jnp.zeros((N_CLASSES,), jnp.float32),
    }
    for _ in range(N_LAYERS):
        wq, wk, wv = nrm((HIDDEN, HIDDEN)), nrm((HIDDEN, HIDDEN)), nrm((HIDDEN, HIDDEN))
        params["layers"].append({
            # Q|K|V concatenated -> one (H, 3H) matmul in the fused kernel.
            "wqkv": jnp.concatenate([wq, wk, wv], axis=1),
            "bqkv": jnp.zeros((3 * HIDDEN,), jnp.float32),
            "wo": nrm((HIDDEN, HIDDEN)), "bo": jnp.zeros((HIDDEN,), jnp.float32),
            "ln1_g": jnp.ones((1, HIDDEN), jnp.float32),
            "ln1_b": jnp.zeros((1, HIDDEN), jnp.float32),
            "w1": nrm((HIDDEN, INTERMEDIATE)),
            "b1": jnp.zeros((INTERMEDIATE,), jnp.float32),
            "w2": nrm((INTERMEDIATE, HIDDEN)),
            "b2": jnp.zeros((HIDDEN,), jnp.float32),
            "ln2_g": jnp.ones((1, HIDDEN), jnp.float32),
            "ln2_b": jnp.zeros((1, HIDDEN), jnp.float32),
        })
    return params


# -------------------------------------------------------------- forward ----
def custom_bert_forward(params, input_ids, attention_mask):
    B, S = input_ids.shape

    # Embeddings (gather is plain-JAX glue), then in-kernel layernorm.
    emb = jnp.take(params["word_emb"], input_ids, axis=0)          # (B, S, H)
    emb = emb + params["pos_emb"][None, :S, :]
    emb = emb + params["type_emb"][0][None, None, :]               # token_type_ids = 0
    h = emb_layernorm(emb.reshape(B * S, HIDDEN),
                      params["emb_ln_g"], params["emb_ln_b"])      # (B*S, H)

    # additive attention mask (0 where attended, -1e9 where padded): (B, S)
    add_mask = (1.0 - attention_mask.astype(jnp.float32)) * -1e9

    for layer in params["layers"]:
        h = transformer_layer(h, add_mask, layer, batch=B, seq=S)  # fused layer

    # Pooler: tanh(dense(h[:, 0])) ; classifier head — fused in one kernel.
    return pooler_classifier(h, params, batch=B, seq=S)            # (B, n_classes)


# ----------------------------------------------------------------- main ----
if __name__ == "__main__":
    key = jax.random.PRNGKey(0)
    pkey, ikey = jax.random.split(key)
    params = init_params(pkey)

    B, S = 2, 8
    input_ids = jax.random.randint(ikey, (B, S), 0, VOCAB, dtype=jnp.int32)
    attention_mask = jnp.ones((B, S), dtype=jnp.int32).at[1, 6:].set(0)

    fwd = jax.jit(lambda ids, m: custom_bert_forward(params, ids, m))
    logits = fwd(input_ids, attention_mask)
    jax.block_until_ready(logits)
    assert logits.shape == (B, N_CLASSES) and logits.dtype == jnp.float32
    print("KERNEL_OK")
</pallas_src>

<mosaic_0001>
module attributes {stable_mosaic.version = 11 : i64} {
  func.func @_emb_ln_kernel(%arg0: memref<16x32xf32, #tpu.memory_space<vmem>>, %arg1: memref<1x32xf32, #tpu.memory_space<vmem>>, %arg2: memref<1x32xf32, #tpu.memory_space<vmem>>, %arg3: memref<16x32xf32, #tpu.memory_space<vmem>>) attributes {dimension_semantics = [], scalar_prefetch = 0 : i64, scratch_operands = 0 : i64, tpu.core_type = #tpu.core_type<tc>} {
    %c0 = arith.constant 0 : index
    %c0_0 = arith.constant 0 : index
    %0 = vector.load %arg0[%c0, %c0_0] : memref<16x32xf32, #tpu.memory_space<vmem>>, vector<16x32xf32>
    %c0_1 = arith.constant 0 : index
    %c0_2 = arith.constant 0 : index
    %1 = vector.load %arg1[%c0_1, %c0_2] : memref<1x32xf32, #tpu.memory_space<vmem>>, vector<1x32xf32>
    %c0_3 = arith.constant 0 : index
    %c0_4 = arith.constant 0 : index
    %2 = vector.load %arg2[%c0_3, %c0_4] : memref<1x32xf32, #tpu.memory_space<vmem>>, vector<1x32xf32>
    %cst = arith.constant dense<0.000000e+00> : vector<16xf32>
    %3 = vector.multi_reduction <add>, %0, %cst [1] : vector<16x32xf32> to vector<16xf32>
    %4 = vector.shape_cast %3 : vector<16xf32> to vector<16x1xf32>
    %cst_5 = arith.constant 3.200000e+01 : f32
    %5 = vector.broadcast %cst_5 : f32 to vector<16x1xf32>
    %6 = arith.divf %4, %5 : vector<16x1xf32>
    %7 = vector.broadcast %6 : vector<16x1xf32> to vector<16x32xf32>
    %8 = arith.subf %0, %7 : vector<16x32xf32>
    %9 = arith.mulf %8, %8 : vector<16x32xf32>
    %cst_6 = arith.constant dense<0.000000e+00> : vector<16xf32>
    %10 = vector.multi_reduction <add>, %9, %cst_6 [1] : vector<16x32xf32> to vector<16xf32>
    %11 = vector.shape_cast %10 : vector<16xf32> to vector<16x1xf32>
    %cst_7 = arith.constant 3.200000e+01 : f32
    %12 = vector.broadcast %cst_7 : f32 to vector<16x1xf32>
    %13 = arith.divf %11, %12 : vector<16x1xf32>
    %14 = vector.broadcast %6 : vector<16x1xf32> to vector<16x32xf32>
    %15 = arith.subf %0, %14 : vector<16x32xf32>
    %cst_8 = arith.constant 9.99999996E-13 : f32
    %16 = vector.broadcast %cst_8 : f32 to vector<16x1xf32>
    %17 = arith.addf %13, %16 : vector<16x1xf32>
    %18 = math.rsqrt %17 : vector<16x1xf32>
    %19 = vector.broadcast %18 : vector<16x1xf32> to vector<16x32xf32>
    %20 = arith.mulf %15, %19 : vector<16x32xf32>
    %21 = vector.broadcast %1 : vector<1x32xf32> to vector<16x32xf32>
    %22 = arith.mulf %20, %21 : vector<16x32xf32>
    %23 = vector.broadcast %2 : vector<1x32xf32> to vector<16x32xf32>
    %24 = arith.addf %22, %23 : vector<16x32xf32>
    %c0_9 = arith.constant 0 : index
    %c0_10 = arith.constant 0 : index
    %25 = vector.load %arg3[%c0_9, %c0_10] : memref<16x32xf32, #tpu.memory_space<vmem>>, vector<16x32xf32>
    tpu.vector_store %arg3[%c0_9, %c0_10], %24 {strides = array<i32>} : memref<16x32xf32, #tpu.memory_space<vmem>>, vector<16x32xf32>,
    return
  }
}

module attributes {stable_mosaic.version = 11 : i64} {
  func.func @_head_kernel(%arg0: memref<16x32xf32, #tpu.memory_space<vmem>>, %arg1: memref<32x32xf32, #tpu.memory_space<vmem>>, %arg2: memref<1x32xf32, #tpu.memory_space<vmem>>, %arg3: memref<32x10xf32, #tpu.memory_space<vmem>>, %arg4: memref<1x10xf32, #tpu.memory_space<vmem>>, %arg5: memref<2x10xf32, #tpu.memory_space<vmem>>) attributes {dimension_semantics = [], scalar_prefetch = 0 : i64, scratch_operands = 0 : i64, tpu.core_type = #tpu.core_type<tc>} {
    %c0 = arith.constant 0 : index
    %c0_0 = arith.constant 0 : index
    %0 = vector.load %arg0[%c0, %c0_0] : memref<16x32xf32, #tpu.memory_space<vmem>>, vector<16x32xf32>
    %1 = vector.extract_strided_slice %0 {offsets = [0, 0], sizes = [1, 32], strides = [1, 1]} : vector<16x32xf32> to vector<1x32xf32>
    %2 = vector.extract_strided_slice %0 {offsets = [8, 0], sizes = [1, 32], strides = [1, 1]} : vector<16x32xf32> to vector<1x32xf32>
    %3 = tpu.concatenate %1, %2 in 0 : vector<1x32xf32>, vector<1x32xf32> -> vector<2x32xf32>
    %c0_1 = arith.constant 0 : index
    %c0_2 = arith.constant 0 : index
    %4 = vector.load %arg1[%c0_1, %c0_2] : memref<32x32xf32, #tpu.memory_space<vmem>>, vector<32x32xf32>
    %cst = arith.constant dense<0.000000e+00> : vector<2x32xf32>
    %5 = tpu.matmul %3, %4, %cst {dimension_numbers = #tpu.dot_dimension_numbers<[1], [0], [0], [1], [0, 0, 1, 1], [], []>} : vector<2x32xf32>, vector<32x32xf32>, vector<2x32xf32> -> vector<2x32xf32>
    %c0_3 = arith.constant 0 : index
    %c0_4 = arith.constant 0 : index
    %6 = vector.load %arg2[%c0_3, %c0_4] : memref<1x32xf32, #tpu.memory_space<vmem>>, vector<1x32xf32>
    %7 = vector.broadcast %6 : vector<1x32xf32> to vector<2x32xf32>
    %8 = arith.addf %5, %7 : vector<2x32xf32>
    %9 = math.tanh %8 : vector<2x32xf32>
    %c0_5 = arith.constant 0 : index
    %c0_6 = arith.constant 0 : index
    %10 = vector.load %arg3[%c0_5, %c0_6] : memref<32x10xf32, #tpu.memory_space<vmem>>, vector<32x10xf32>
    %cst_7 = arith.constant dense<0.000000e+00> : vector<2x10xf32>
    %11 = tpu.matmul %9, %10, %cst_7 {dimension_numbers = #tpu.dot_dimension_numbers<[1], [0], [0], [1], [0, 0, 1, 1], [], []>} : vector<2x32xf32>, vector<32x10xf32>, vector<2x10xf32> -> vector<2x10xf32>
    %c0_8 = arith.constant 0 : index
    %c0_9 = arith.constant 0 : index
    %12 = vector.load %arg4[%c0_8, %c0_9] : memref<1x10xf32, #tpu.memory_space<vmem>>, vector<1x10xf32>
    %13 = vector.broadcast %12 : vector<1x10xf32> to vector<2x10xf32>
    %14 = arith.addf %11, %13 : vector<2x10xf32>
    %c0_10 = arith.constant 0 : index
    %c0_11 = arith.constant 0 : index
    %15 = vector.load %arg5[%c0_10, %c0_11] : memref<2x10xf32, #tpu.memory_space<vmem>>, vector<2x10xf32>
    tpu.vector_store %arg5[%c0_10, %c0_11], %14 {strides = array<i32>} : memref<2x10xf32, #tpu.memory_space<vmem>>, vector<2x10xf32>,
    return
  }
}

module attributes {stable_mosaic.version = 11 : i64} {
  func.func @_layer_kernel(%arg0: memref<16x32xf32, #tpu.memory_space<vmem>>, %arg1: memref<2x8xf32, #tpu.memory_space<vmem>>, %arg2: memref<32x96xf32, #tpu.memory_space<vmem>>, %arg3: memref<1x96xf32, #tpu.memory_space<vmem>>, %arg4: memref<32x32xf32, #tpu.memory_space<vmem>>, %arg5: memref<1x32xf32, #tpu.memory_space<vmem>>, %arg6: memref<1x32xf32, #tpu.memory_space<vmem>>, %arg7: memref<1x32xf32, #tpu.memory_space<vmem>>, %arg8: memref<32x64xf32, #tpu.memory_space<vmem>>, %arg9: memref<1x64xf32, #tpu.memory_space<vmem>>, %arg10: memref<64x32xf32, #tpu.memory_space<vmem>>, %arg11: memref<1x32xf32, #tpu.memory_space<vmem>>, %arg12: memref<1x32xf32, #tpu.memory_space<vmem>>, %arg13: memref<1x32xf32, #tpu.memory_space<vmem>>, %arg14: memref<16x32xf32, #tpu.memory_space<vmem>>) attributes {dimension_semantics = [], scalar_prefetch = 0 : i64, scratch_operands = 0 : i64, tpu.core_type = #tpu.core_type<tc>} {
    %c0 = arith.constant 0 : index
    %c0_0 = arith.constant 0 : index
    %0 = vector.load %arg0[%c0, %c0_0] : memref<16x32xf32, #tpu.memory_space<vmem>>, vector<16x32xf32>
    %c0_1 = arith.constant 0 : index
    %c0_2 = arith.constant 0 : index
    %1 = vector.load %arg2[%c0_1, %c0_2] : memref<32x96xf32, #tpu.memory_space<vmem>>, vector<32x96xf32>
    %cst = arith.constant dense<0.000000e+00> : vector<16x96xf32>
    %2 = tpu.matmul %0, %1, %cst {dimension_numbers = #tpu.dot_dimension_numbers<[1], [0], [0], [1], [0, 0, 1, 1], [], []>} : vector<16x32xf32>, vector<32x96xf32>, vector<16x96xf32> -> vector<16x96xf32>
    %c0_3 = arith.constant 0 : index
    %c0_4 = arith.constant 0 : index
    %3 = vector.load %arg3[%c0_3, %c0_4] : memref<1x96xf32, #tpu.memory_space<vmem>>, vector<1x96xf32>
    %4 = vector.broadcast %3 : vector<1x96xf32> to vector<16x96xf32>
    %5 = arith.addf %2, %4 : vector<16x96xf32>
    %6 = vector.extract_strided_slice %5 {offsets = [0, 0], sizes = [16, 32], strides = [1, 1]} : vector<16x96xf32> to vector<16x32xf32>
    %cst_5 = arith.constant 2.500000e-01 : f32
    %7 = vector.broadcast %cst_5 : f32 to vector<16x32xf32>
    %8 = arith.mulf %6, %7 : vector<16x32xf32>
    %9 = vector.extract_strided_slice %5 {offsets = [0, 32], sizes = [16, 32], strides = [1, 1]} : vector<16x96xf32> to vector<16x32xf32>
    %10 = vector.extract_strided_slice %5 {offsets = [0, 64], sizes = [16, 32], strides = [1, 1]} : vector<16x96xf32> to vector<16x32xf32>
    %c0_6 = arith.constant 0 : index
    %c0_7 = arith.constant 0 : index
    %11 = vector.load %arg1[%c0_6, %c0_7] : memref<2x8xf32, #tpu.memory_space<vmem>>, vector<2x8xf32>
    %12 = vector.extract_strided_slice %8 {offsets = [0, 0], sizes = [8, 16], strides = [1, 1]} : vector<16x32xf32> to vector<8x16xf32>
    %13 = vector.extract_strided_slice %9 {offsets = [0, 0], sizes = [8, 16], strides = [1, 1]} : vector<16x32xf32> to vector<8x16xf32>
    %14 = vector.extract_strided_slice %10 {offsets = [0, 0], sizes = [8, 16], strides = [1, 1]} : vector<16x32xf32> to vector<8x16xf32>
    %cst_8 = arith.constant dense<0.000000e+00> : vector<8x8xf32>
    %15 = tpu.matmul %12, %13, %cst_8 {dimension_numbers = #tpu.dot_dimension_numbers<[1], [1], [0], [0], [0, 0, 1, 0], [], []>} : vector<8x16xf32>, vector<8x16xf32>, vector<8x8xf32> -> vector<8x8xf32>
    %16 = vector.extract_strided_slice %11 {offsets = [0, 0], sizes = [1, 8], strides = [1, 1]} : vector<2x8xf32> to vector<1x8xf32>
    %17 = vector.broadcast %16 : vector<1x8xf32> to vector<8x8xf32>
    %18 = arith.addf %15, %17 : vector<8x8xf32>
    %cst_9 = arith.constant dense<0xFF800000> : vector<8xf32>
    %19 = vector.multi_reduction <maximumf>, %18, %cst_9 [1] : vector<8x8xf32> to vector<8xf32>
    %20 = vector.shape_cast %19 : vector<8xf32> to vector<8x1xf32>
    %21 = vector.broadcast %20 : vector<8x1xf32> to vector<8x8xf32>
    %22 = arith.subf %18, %21 : vector<8x8xf32>
    %23 = math.exp %22 : vector<8x8xf32>
    %cst_10 = arith.constant dense<0.000000e+00> : vector<8xf32>
    %24 = vector.multi_reduction <add>, %23, %cst_10 [1] : vector<8x8xf32> to vector<8xf32>
    %25 = vector.shape_cast %24 : vector<8xf32> to vector<8x1xf32>
    %26 = tpu.reciprocal %25 {approx = true} : vector<8x1xf32> -> vector<8x1xf32>
    %27 = vector.broadcast %26 : vector<8x1xf32> to vector<8x8xf32>
    %28 = arith.mulf %23, %27 : vector<8x8xf32>
    %cst_11 = arith.constant dense<0.000000e+00> : vector<8x16xf32>
    %29 = tpu.matmul %28, %14, %cst_11 {dimension_numbers = #tpu.dot_dimension_numbers<[1], [0], [0], [1], [0, 0, 1, 1], [], []>} : vector<8x8xf32>, vector<8x16xf32>, vector<8x16xf32> -> vector<8x16xf32>
    %30 = vector.extract_strided_slice %8 {offsets = [0, 16], sizes = [8, 16], strides = [1, 1]} : vector<16x32xf32> to vector<8x16xf32>
    %31 = vector.extract_strided_slice %9 {offsets = [0, 16], sizes = [8, 16], strides = [1, 1]} : vector<16x32xf32> to vector<8x16xf32>
    %32 = vector.extract_strided_slice %10 {offsets = [0, 16], sizes = [8, 16], strides = [1, 1]} : vector<16x32xf32> to vector<8x16xf32>
    %cst_12 = arith.constant dense<0.000000e+00> : vector<8x8xf32>
    %33 = tpu.matmul %30, %31, %cst_12 {dimension_numbers = #tpu.dot_dimension_numbers<[1], [1], [0], [0], [0, 0, 1, 0], [], []>} : vector<8x16xf32>, vector<8x16xf32>, vector<8x8xf32> -> vector<8x8xf32>
    %34 = vector.extract_strided_slice %11 {offsets = [0, 0], sizes = [1, 8], strides = [1, 1]} : vector<2x8xf32> to vector<1x8xf32>
    %35 = vector.broadcast %34 : vector<1x8xf32> to vector<8x8xf32>
    %36 = arith.addf %33, %35 : vector<8x8xf32>
    %cst_13 = arith.constant dense<0xFF800000> : vector<8xf32>
    %37 = vector.multi_reduction <maximumf>, %36, %cst_13 [1] : vector<8x8xf32> to vector<8xf32>
    %38 = vector.shape_cast %37 : vector<8xf32> to vector<8x1xf32>
    %39 = vector.broadcast %38 : vector<8x1xf32> to vector<8x8xf32>
    %40 = arith.subf %36, %39 : vector<8x8xf32>
    %41 = math.exp %40 : vector<8x8xf32>
    %cst_14 = arith.constant dense<0.000000e+00> : vector<8xf32>
    %42 = vector.multi_reduction <add>, %41, %cst_14 [1] : vector<8x8xf32> to vector<8xf32>
    %43 = vector.shape_cast %42 : vector<8xf32> to vector<8x1xf32>
    %44 = tpu.reciprocal %43 {approx = true} : vector<8x1xf32> -> vector<8x1xf32>
    %45 = vector.broadcast %44 : vector<8x1xf32> to vector<8x8xf32>
    %46 = arith.mulf %41, %45 : vector<8x8xf32>
    %cst_15 = arith.constant dense<0.000000e+00> : vector<8x16xf32>
    %47 = tpu.matmul %46, %32, %cst_15 {dimension_numbers = #tpu.dot_dimension_numbers<[1], [0], [0], [1], [0, 0, 1, 1], [], []>} : vector<8x8xf32>, vector<8x16xf32>, vector<8x16xf32> -> vector<8x16xf32>
    %48 = tpu.concatenate %29, %47 in 1 : vector<8x16xf32>, vector<8x16xf32> -> vector<8x32xf32>
    %49 = vector.extract_strided_slice %8 {offsets = [8, 0], sizes = [8, 16], strides = [1, 1]} : vector<16x32xf32> to vector<8x16xf32>
    %50 = vector.extract_strided_slice %9 {offsets = [8, 0], sizes = [8, 16], strides = [1, 1]} : vector<16x32xf32> to vector<8x16xf32>
    %51 = vector.extract_strided_slice %10 {offsets = [8, 0], sizes = [8, 16], strides = [1, 1]} : vector<16x32xf32> to vector<8x16xf32>
    %cst_16 = arith.constant dense<0.000000e+00> : vector<8x8xf32>
    %52 = tpu.matmul %49, %50, %cst_16 {dimension_numbers = #tpu.dot_dimension_numbers<[1], [1], [0], [0], [0, 0, 1, 0], [], []>} : vector<8x16xf32>, vector<8x16xf32>, vector<8x8xf32> -> vector<8x8xf32>
    %53 = vector.extract_strided_slice %11 {offsets = [1, 0], sizes = [1, 8], strides = [1, 1]} : vector<2x8xf32> to vector<1x8xf32>
    %54 = vector.broadcast %53 : vector<1x8xf32> to vector<8x8xf32>
    %55 = arith.addf %52, %54 : vector<8x8xf32>
    %cst_17 = arith.constant dense<0xFF800000> : vector<8xf32>
    %56 = vector.multi_reduction <maximumf>, %55, %cst_17 [1] : vector<8x8xf32> to vector<8xf32>
    %57 = vector.shape_cast %56 : vector<8xf32> to vector<8x1xf32>
    %58 = vector.broadcast %57 : vector<8x1xf32> to vector<8x8xf32>
    %59 = arith.subf %55, %58 : vector<8x8xf32>
    %60 = math.exp %59 : vector<8x8xf32>
    %cst_18 = arith.constant dense<0.000000e+00> : vector<8xf32>
    %61 = vector.multi_reduction <add>, %60, %cst_18 [1] : vector<8x8xf32> to vector<8xf32>
    %62 = vector.shape_cast %61 : vector<8xf32> to vector<8x1xf32>
    %63 = tpu.reciprocal %62 {approx = true} : vector<8x1xf32> -> vector<8x1xf32>
    %64 = vector.broadcast %63 : vector<8x1xf32> to vector<8x8xf32>
    %65 = arith.mulf %60, %64 : vector<8x8xf32>
    %cst_19 = arith.constant dense<0.000000e+00> : vector<8x16xf32>
    %66 = tpu.matmul %65, %51, %cst_19 {dimension_numbers = #tpu.dot_dimension_numbers<[1], [0], [0], [1], [0, 0, 1, 1], [], []>} : vector<8x8xf32>, vector<8x16xf32>, vector<8x16xf32> -> vector<8x16xf32>
    %67 = vector.extract_strided_slice %8 {offsets = [8, 16], sizes = [8, 16], strides = [1, 1]} : vector<16x32xf32> to vector<8x16xf32>
    %68 = vector.extract_strided_slice %9 {offsets = [8, 16], sizes = [8, 16], strides = [1, 1]} : vector<16x32xf32> to vector<8x16xf32>
    %69 = vector.extract_strided_slice %10 {offsets = [8, 16], sizes = [8, 16], strides = [1, 1]} : vector<16x32xf32> to vector<8x16xf32>
    %cst_20 = arith.constant dense<0.000000e+00> : vector<8x8xf32>
    %70 = tpu.matmul %67, %68, %cst_20 {dimension_numbers = #tpu.dot_dimension_numbers<[1], [1], [0], [0], [0, 0, 1, 0], [], []>} : vector<8x16xf32>, vector<8x16xf32>, vector<8x8xf32> -> vector<8x8xf32>
    %71 = vector.extract_strided_slice %11 {offsets = [1, 0], sizes = [1, 8], strides = [1, 1]} : vector<2x8xf32> to vector<1x8xf32>
    %72 = vector.broadcast %71 : vector<1x8xf32> to vector<8x8xf32>
    %73 = arith.addf %70, %72 : vector<8x8xf32>
    %cst_21 = arith.constant dense<0xFF800000> : vector<8xf32>
    %74 = vector.multi_reduction <maximumf>, %73, %cst_21 [1] : vector<8x8xf32> to vector<8xf32>
    %75 = vector.shape_cast %74 : vector<8xf32> to vector<8x1xf32>
    %76 = vector.broadcast %75 : vector<8x1xf32> to vector<8x8xf32>
    %77 = arith.subf %73, %76 : vector<8x8xf32>
    %78 = math.exp %77 : vector<8x8xf32>
    %cst_22 = arith.constant dense<0.000000e+00> : vector<8xf32>
    %79 = vector.multi_reduction <add>, %78, %cst_22 [1] : vector<8x8xf32> to vector<8xf32>
    %80 = vector.shape_cast %79 : vector<8xf32> to vector<8x1xf32>
    %81 = tpu.reciprocal %80 {approx = true} : vector<8x1xf32> -> vector<8x1xf32>
    %82 = vector.broadcast %81 : vector<8x1xf32> to vector<8x8xf32>
    %83 = arith.mulf %78, %82 : vector<8x8xf32>
    %cst_23 = arith.constant dense<0.000000e+00> : vector<8x16xf32>
    %84 = tpu.matmul %83, %69, %cst_23 {dimension_numbers = #tpu.dot_dimension_numbers<[1], [0], [0], [1], [0, 0, 1, 1], [], []>} : vector<8x8xf32>, vector<8x16xf32>, vector<8x16xf32> -> vector<8x16xf32>
    %85 = tpu.concatenate %66, %84 in 1 : vector<8x16xf32>, vector<8x16xf32> -> vector<8x32xf32>
    %86 = tpu.concatenate %48, %85 in 0 : vector<8x32xf32>, vector<8x32xf32> -> vector<16x32xf32>
    %c0_24 = arith.constant 0 : index
    %c0_25 = arith.constant 0 : index
    %87 = vector.load %arg4[%c0_24, %c0_25] : memref<32x32xf32, #tpu.memory_space<vmem>>, vector<32x32xf32>
    %cst_26 = arith.constant dense<0.000000e+00> : vector<16x32xf32>
    %88 = tpu.matmul %86, %87, %cst_26 {dimension_numbers = #tpu.dot_dimension_numbers<[1], [0], [0], [1], [0, 0, 1, 1], [], []>} : vector<16x32xf32>, vector<32x32xf32>, vector<16x32xf32> -> vector<16x32xf32>
    %c0_27 = arith.constant 0 : index
    %c0_28 = arith.constant 0 : index
    %89 = vector.load %arg5[%c0_27, %c0_28] : memref<1x32xf32, #tpu.memory_space<vmem>>, vector<1x32xf32>
    %90 = vector.broadcast %89 : vector<1x32xf32> to vector<16x32xf32>
    %91 = arith.addf %88, %90 : vector<16x32xf32>
    %92 = arith.addf %91, %0 : vector<16x32xf32>
    %c0_29 = arith.constant 0 : index
    %c0_30 = arith.constant 0 : index
    %93 = vector.load %arg6[%c0_29, %c0_30] : memref<1x32xf32, #tpu.memory_space<vmem>>, vector<1x32xf32>
    %c0_31 = arith.constant 0 : index
    %c0_32 = arith.constant 0 : index
    %94 = vector.load %arg7[%c0_31, %c0_32] : memref<1x32xf32, #tpu.memory_space<vmem>>, vector<1x32xf32>
    %cst_33 = arith.constant dense<0.000000e+00> : vector<16xf32>
    %95 = vector.multi_reduction <add>, %92, %cst_33 [1] : vector<16x32xf32> to vector<16xf32>
    %96 = vector.shape_cast %95 : vector<16xf32> to vector<16x1xf32>
    %cst_34 = arith.constant 3.200000e+01 : f32
    %97 = vector.broadcast %cst_34 : f32 to vector<16x1xf32>
    %98 = arith.divf %96, %97 : vector<16x1xf32>
    %99 = vector.broadcast %98 : vector<16x1xf32> to vector<16x32xf32>
    %100 = arith.subf %92, %99 : vector<16x32xf32>
    %101 = arith.mulf %100, %100 : vector<16x32xf32>
    %cst_35 = arith.constant dense<0.000000e+00> : vector<16xf32>
    %102 = vector.multi_reduction <add>, %101, %cst_35 [1] : vector<16x32xf32> to vector<16xf32>
    %103 = vector.shape_cast %102 : vector<16xf32> to vector<16x1xf32>
    %cst_36 = arith.constant 3.200000e+01 : f32
    %104 = vector.broadcast %cst_36 : f32 to vector<16x1xf32>
    %105 = arith.divf %103, %104 : vector<16x1xf32>
    %106 = vector.broadcast %98 : vector<16x1xf32> to vector<16x32xf32>
    %107 = arith.subf %92, %106 : vector<16x32xf32>
    %cst_37 = arith.constant 9.99999996E-13 : f32
    %108 = vector.broadcast %cst_37 : f32 to vector<16x1xf32>
    %109 = arith.addf %105, %108 : vector<16x1xf32>
    %110 = math.rsqrt %109 : vector<16x1xf32>
    %111 = vector.broadcast %110 : vector<16x1xf32> to vector<16x32xf32>
    %112 = arith.mulf %107, %111 : vector<16x32xf32>
    %113 = vector.broadcast %93 : vector<1x32xf32> to vector<16x32xf32>
    %114 = arith.mulf %112, %113 : vector<16x32xf32>
    %115 = vector.broadcast %94 : vector<1x32xf32> to vector<16x32xf32>
    %116 = arith.addf %114, %115 : vector<16x32xf32>
    %c0_38 = arith.constant 0 : index
    %c0_39 = arith.constant 0 : index
    %117 = vector.load %arg8[%c0_38, %c0_39] : memref<32x64xf32, #tpu.memory_space<vmem>>, vector<32x64xf32>
    %cst_40 = arith.constant dense<0.000000e+00> : vector<16x64xf32>
    %118 = tpu.matmul %116, %117, %cst_40 {dimension_numbers = #tpu.dot_dimension_numbers<[1], [0], [0], [1], [0, 0, 1, 1], [], []>} : vector<16x32xf32>, vector<32x64xf32>, vector<16x64xf32> -> vector<16x64xf32>
    %c0_41 = arith.constant 0 : index
    %c0_42 = arith.constant 0 : index
    %119 = vector.load %arg9[%c0_41, %c0_42] : memref<1x64xf32, #tpu.memory_space<vmem>>, vector<1x64xf32>
    %120 = vector.broadcast %119 : vector<1x64xf32> to vector<16x64xf32>
    %121 = arith.addf %118, %120 : vector<16x64xf32>
    %cst_43 = arith.constant 5.000000e-01 : f32
    %122 = vector.broadcast %cst_43 : f32 to vector<16x64xf32>
    %123 = arith.mulf %122, %121 : vector<16x64xf32>
    %cst_44 = arith.constant 4.471500e-02 : f32
    %124 = vector.broadcast %cst_44 : f32 to vector<16x64xf32>
    %125 = arith.mulf %124, %121 : vector<16x64xf32>
    %126 = arith.mulf %125, %121 : vector<16x64xf32>
    %127 = arith.mulf %126, %121 : vector<16x64xf32>
    %128 = arith.addf %121, %127 : vector<16x64xf32>
    %cst_45 = arith.constant 0.797884583 : f32
    %129 = vector.broadcast %cst_45 : f32 to vector<16x64xf32>
    %130 = arith.mulf %129, %128 : vector<16x64xf32>
    %131 = math.tanh %130 : vector<16x64xf32>
    %cst_46 = arith.constant 1.000000e+00 : f32
    %132 = vector.broadcast %cst_46 : f32 to vector<16x64xf32>
    %133 = arith.addf %132, %131 : vector<16x64xf32>
    %134 = arith.mulf %123, %133 : vector<16x64xf32>
    %c0_47 = arith.constant 0 : index
    %c0_48 = arith.constant 0 : index
    %135 = vector.load %arg10[%c0_47, %c0_48] : memref<64x32xf32, #tpu.memory_space<vmem>>, vector<64x32xf32>
    %cst_49 = arith.constant dense<0.000000e+00> : vector<16x32xf32>
    %136 = tpu.matmul %134, %135, %cst_49 {dimension_numbers = #tpu.dot_dimension_numbers<[1], [0], [0], [1], [0, 0, 1, 1], [], []>} : vector<16x64xf32>, vector<64x32xf32>, vector<16x32xf32> -> vector<16x32xf32>
    %c0_50 = arith.constant 0 : index
    %c0_51 = arith.constant 0 : index
    %137 = vector.load %arg11[%c0_50, %c0_51] : memref<1x32xf32, #tpu.memory_space<vmem>>, vector<1x32xf32>
    %138 = vector.broadcast %137 : vector<1x32xf32> to vector<16x32xf32>
    %139 = arith.addf %136, %138 : vector<16x32xf32>
    %140 = arith.addf %139, %116 : vector<16x32xf32>
    %c0_52 = arith.constant 0 : index
    %c0_53 = arith.constant 0 : index
    %141 = vector.load %arg12[%c0_52, %c0_53] : memref<1x32xf32, #tpu.memory_space<vmem>>, vector<1x32xf32>
    %c0_54 = arith.constant 0 : index
    %c0_55 = arith.constant 0 : index
    %142 = vector.load %arg13[%c0_54, %c0_55] : memref<1x32xf32, #tpu.memory_space<vmem>>, vector<1x32xf32>
    %cst_56 = arith.constant dense<0.000000e+00> : vector<16xf32>
    %143 = vector.multi_reduction <add>, %140, %cst_56 [1] : vector<16x32xf32> to vector<16xf32>
    %144 = vector.shape_cast %143 : vector<16xf32> to vector<16x1xf32>
    %cst_57 = arith.constant 3.200000e+01 : f32
    %145 = vector.broadcast %cst_57 : f32 to vector<16x1xf32>
    %146 = arith.divf %144, %145 : vector<16x1xf32>
    %147 = vector.broadcast %146 : vector<16x1xf32> to vector<16x32xf32>
    %148 = arith.subf %140, %147 : vector<16x32xf32>
    %149 = arith.mulf %148, %148 : vector<16x32xf32>
    %cst_58 = arith.constant dense<0.000000e+00> : vector<16xf32>
    %150 = vector.multi_reduction <add>, %149, %cst_58 [1] : vector<16x32xf32> to vector<16xf32>
    %151 = vector.shape_cast %150 : vector<16xf32> to vector<16x1xf32>
    %cst_59 = arith.constant 3.200000e+01 : f32
    %152 = vector.broadcast %cst_59 : f32 to vector<16x1xf32>
    %153 = arith.divf %151, %152 : vector<16x1xf32>
    %154 = vector.broadcast %146 : vector<16x1xf32> to vector<16x32xf32>
    %155 = arith.subf %140, %154 : vector<16x32xf32>
    %cst_60 = arith.constant 9.99999996E-13 : f32
    %156 = vector.broadcast %cst_60 : f32 to vector<16x1xf32>
    %157 = arith.addf %153, %156 : vector<16x1xf32>
    %158 = math.rsqrt %157 : vector<16x1xf32>
    %159 = vector.broadcast %158 : vector<16x1xf32> to vector<16x32xf32>
    %160 = arith.mulf %155, %159 : vector<16x32xf32>
    %161 = vector.broadcast %141 : vector<1x32xf32> to vector<16x32xf32>
    %162 = arith.mulf %160, %161 : vector<16x32xf32>
    %163 = vector.broadcast %142 : vector<1x32xf32> to vector<16x32xf32>
    %164 = arith.addf %162, %163 : vector<16x32xf32>
    %c0_61 = arith.constant 0 : index
    %c0_62 = arith.constant 0 : index
    %165 = vector.load %arg14[%c0_61, %c0_62] : memref<16x32xf32, #tpu.memory_space<vmem>>, vector<16x32xf32>
    tpu.vector_store %arg14[%c0_61, %c0_62], %164 {strides = array<i32>} : memref<16x32xf32, #tpu.memory_space<vmem>>, vector<16x32xf32>,
    return
  }
}

module attributes {stable_mosaic.version = 11 : i64} {
  func.func @_layer_kernel(%arg0: memref<16x32xf32, #tpu.memory_space<vmem>>, %arg1: memref<2x8xf32, #tpu.memory_space<vmem>>, %arg2: memref<32x96xf32, #tpu.memory_space<vmem>>, %arg3: memref<1x96xf32, #tpu.memory_space<vmem>>, %arg4: memref<32x32xf32, #tpu.memory_space<vmem>>, %arg5: memref<1x32xf32, #tpu.memory_space<vmem>>, %arg6: memref<1x32xf32, #tpu.memory_space<vmem>>, %arg7: memref<1x32xf32, #tpu.memory_space<vmem>>, %arg8: memref<32x64xf32, #tpu.memory_space<vmem>>, %arg9: memref<1x64xf32, #tpu.memory_space<vmem>>, %arg10: memref<64x32xf32, #tpu.memory_space<vmem>>, %arg11: memref<1x32xf32, #tpu.memory_space<vmem>>, %arg12: memref<1x32xf32, #tpu.memory_space<vmem>>, %arg13: memref<1x32xf32, #tpu.memory_space<vmem>>, %arg14: memref<16x32xf32, #tpu.memory_space<vmem>>) attributes {dimension_semantics = [], scalar_prefetch = 0 : i64, scratch_operands = 0 : i64, tpu.core_type = #tpu.core_type<tc>} {
    %c0 = arith.constant 0 : index
    %c0_0 = arith.constant 0 : index
    %0 = vector.load %arg0[%c0, %c0_0] : memref<16x32xf32, #tpu.memory_space<vmem>>, vector<16x32xf32>
    %c0_1 = arith.constant 0 : index
    %c0_2 = arith.constant 0 : index
    %1 = vector.load %arg2[%c0_1, %c0_2] : memref<32x96xf32, #tpu.memory_space<vmem>>, vector<32x96xf32>
    %cst = arith.constant dense<0.000000e+00> : vector<16x96xf32>
    %2 = tpu.matmul %0, %1, %cst {dimension_numbers = #tpu.dot_dimension_numbers<[1], [0], [0], [1], [0, 0, 1, 1], [], []>} : vector<16x32xf32>, vector<32x96xf32>, vector<16x96xf32> -> vector<16x96xf32>
    %c0_3 = arith.constant 0 : index
    %c0_4 = arith.constant 0 : index
    %3 = vector.load %arg3[%c0_3, %c0_4] : memref<1x96xf32, #tpu.memory_space<vmem>>, vector<1x96xf32>
    %4 = vector.broadcast %3 : vector<1x96xf32> to vector<16x96xf32>
    %5 = arith.addf %2, %4 : vector<16x96xf32>
    %6 = vector.extract_strided_slice %5 {offsets = [0, 0], sizes = [16, 32], strides = [1, 1]} : vector<16x96xf32> to vector<16x32xf32>
    %cst_5 = arith.constant 2.500000e-01 : f32
    %7 = vector.broadcast %cst_5 : f32 to vector<16x32xf32>
    %8 = arith.mulf %6, %7 : vector<16x32xf32>
    %9 = vector.extract_strided_slice %5 {offsets = [0, 32], sizes = [16, 32], strides = [1, 1]} : vector<16x96xf32> to vector<16x32xf32>
    %10 = vector.extract_strided_slice %5 {offsets = [0, 64], sizes = [16, 32], strides = [1, 1]} : vector<16x96xf32> to vector<16x32xf32>
    %c0_6 = arith.constant 0 : index
    %c0_7 = arith.constant 0 : index
    %11 = vector.load %arg1[%c0_6, %c0_7] : memref<2x8xf32, #tpu.memory_space<vmem>>, vector<2x8xf32>
    %12 = vector.extract_strided_slice %8 {offsets = [0, 0], sizes = [8, 16], strides = [1, 1]} : vector<16x32xf32> to vector<8x16xf32>
    %13 = vector.extract_strided_slice %9 {offsets = [0, 0], sizes = [8, 16], strides = [1, 1]} : vector<16x32xf32> to vector<8x16xf32>
    %14 = vector.extract_strided_slice %10 {offsets = [0, 0], sizes = [8, 16], strides = [1, 1]} : vector<16x32xf32> to vector<8x16xf32>
    %cst_8 = arith.constant dense<0.000000e+00> : vector<8x8xf32>
    %15 = tpu.matmul %12, %13, %cst_8 {dimension_numbers = #tpu.dot_dimension_numbers<[1], [1], [0], [0], [0, 0, 1, 0], [], []>} : vector<8x16xf32>, vector<8x16xf32>, vector<8x8xf32> -> vector<8x8xf32>
    %16 = vector.extract_strided_slice %11 {offsets = [0, 0], sizes = [1, 8], strides = [1, 1]} : vector<2x8xf32> to vector<1x8xf32>
    %17 = vector.broadcast %16 : vector<1x8xf32> to vector<8x8xf32>
    %18 = arith.addf %15, %17 : vector<8x8xf32>
    %cst_9 = arith.constant dense<0xFF800000> : vector<8xf32>
    %19 = vector.multi_reduction <maximumf>, %18, %cst_9 [1] : vector<8x8xf32> to vector<8xf32>
    %20 = vector.shape_cast %19 : vector<8xf32> to vector<8x1xf32>
    %21 = vector.broadcast %20 : vector<8x1xf32> to vector<8x8xf32>
    %22 = arith.subf %18, %21 : vector<8x8xf32>
    %23 = math.exp %22 : vector<8x8xf32>
    %cst_10 = arith.constant dense<0.000000e+00> : vector<8xf32>
    %24 = vector.multi_reduction <add>, %23, %cst_10 [1] : vector<8x8xf32> to vector<8xf32>
    %25 = vector.shape_cast %24 : vector<8xf32> to vector<8x1xf32>
    %26 = tpu.reciprocal %25 {approx = true} : vector<8x1xf32> -> vector<8x1xf32>
    %27 = vector.broadcast %26 : vector<8x1xf32> to vector<8x8xf32>
    %28 = arith.mulf %23, %27 : vector<8x8xf32>
    %cst_11 = arith.constant dense<0.000000e+00> : vector<8x16xf32>
    %29 = tpu.matmul %28, %14, %cst_11 {dimension_numbers = #tpu.dot_dimension_numbers<[1], [0], [0], [1], [0, 0, 1, 1], [], []>} : vector<8x8xf32>, vector<8x16xf32>, vector<8x16xf32> -> vector<8x16xf32>
    %30 = vector.extract_strided_slice %8 {offsets = [0, 16], sizes = [8, 16], strides = [1, 1]} : vector<16x32xf32> to vector<8x16xf32>
    %31 = vector.extract_strided_slice %9 {offsets = [0, 16], sizes = [8, 16], strides = [1, 1]} : vector<16x32xf32> to vector<8x16xf32>
    %32 = vector.extract_strided_slice %10 {offsets = [0, 16], sizes = [8, 16], strides = [1, 1]} : vector<16x32xf32> to vector<8x16xf32>
    %cst_12 = arith.constant dense<0.000000e+00> : vector<8x8xf32>
    %33 = tpu.matmul %30, %31, %cst_12 {dimension_numbers = #tpu.dot_dimension_numbers<[1], [1], [0], [0], [0, 0, 1, 0], [], []>} : vector<8x16xf32>, vector<8x16xf32>, vector<8x8xf32> -> vector<8x8xf32>
    %34 = vector.extract_strided_slice %11 {offsets = [0, 0], sizes = [1, 8], strides = [1, 1]} : vector<2x8xf32> to vector<1x8xf32>
    %35 = vector.broadcast %34 : vector<1x8xf32> to vector<8x8xf32>
    %36 = arith.addf %33, %35 : vector<8x8xf32>
    %cst_13 = arith.constant dense<0xFF800000> : vector<8xf32>
    %37 = vector.multi_reduction <maximumf>, %36, %cst_13 [1] : vector<8x8xf32> to vector<8xf32>
    %38 = vector.shape_cast %37 : vector<8xf32> to vector<8x1xf32>
    %39 = vector.broadcast %38 : vector<8x1xf32> to vector<8x8xf32>
    %40 = arith.subf %36, %39 : vector<8x8xf32>
    %41 = math.exp %40 : vector<8x8xf32>
    %cst_14 = arith.constant dense<0.000000e+00> : vector<8xf32>
    %42 = vector.multi_reduction <add>, %41, %cst_14 [1] : vector<8x8xf32> to vector<8xf32>
    %43 = vector.shape_cast %42 : vector<8xf32> to vector<8x1xf32>
    %44 = tpu.reciprocal %43 {approx = true} : vector<8x1xf32> -> vector<8x1xf32>
    %45 = vector.broadcast %44 : vector<8x1xf32> to vector<8x8xf32>
    %46 = arith.mulf %41, %45 : vector<8x8xf32>
    %cst_15 = arith.constant dense<0.000000e+00> : vector<8x16xf32>
    %47 = tpu.matmul %46, %32, %cst_15 {dimension_numbers = #tpu.dot_dimension_numbers<[1], [0], [0], [1], [0, 0, 1, 1], [], []>} : vector<8x8xf32>, vector<8x16xf32>, vector<8x16xf32> -> vector<8x16xf32>
    %48 = tpu.concatenate %29, %47 in 1 : vector<8x16xf32>, vector<8x16xf32> -> vector<8x32xf32>
    %49 = vector.extract_strided_slice %8 {offsets = [8, 0], sizes = [8, 16], strides = [1, 1]} : vector<16x32xf32> to vector<8x16xf32>
    %50 = vector.extract_strided_slice %9 {offsets = [8, 0], sizes = [8, 16], strides = [1, 1]} : vector<16x32xf32> to vector<8x16xf32>
    %51 = vector.extract_strided_slice %10 {offsets = [8, 0], sizes = [8, 16], strides = [1, 1]} : vector<16x32xf32> to vector<8x16xf32>
    %cst_16 = arith.constant dense<0.000000e+00> : vector<8x8xf32>
    %52 = tpu.matmul %49, %50, %cst_16 {dimension_numbers = #tpu.dot_dimension_numbers<[1], [1], [0], [0], [0, 0, 1, 0], [], []>} : vector<8x16xf32>, vector<8x16xf32>, vector<8x8xf32> -> vector<8x8xf32>
    %53 = vector.extract_strided_slice %11 {offsets = [1, 0], sizes = [1, 8], strides = [1, 1]} : vector<2x8xf32> to vector<1x8xf32>
    %54 = vector.broadcast %53 : vector<1x8xf32> to vector<8x8xf32>
    %55 = arith.addf %52, %54 : vector<8x8xf32>
    %cst_17 = arith.constant dense<0xFF800000> : vector<8xf32>
    %56 = vector.multi_reduction <maximumf>, %55, %cst_17 [1] : vector<8x8xf32> to vector<8xf32>
    %57 = vector.shape_cast %56 : vector<8xf32> to vector<8x1xf32>
    %58 = vector.broadcast %57 : vector<8x1xf32> to vector<8x8xf32>
    %59 = arith.subf %55, %58 : vector<8x8xf32>
    %60 = math.exp %59 : vector<8x8xf32>
    %cst_18 = arith.constant dense<0.000000e+00> : vector<8xf32>
    %61 = vector.multi_reduction <add>, %60, %cst_18 [1] : vector<8x8xf32> to vector<8xf32>
    %62 = vector.shape_cast %61 : vector<8xf32> to vector<8x1xf32>
    %63 = tpu.reciprocal %62 {approx = true} : vector<8x1xf32> -> vector<8x1xf32>
    %64 = vector.broadcast %63 : vector<8x1xf32> to vector<8x8xf32>
    %65 = arith.mulf %60, %64 : vector<8x8xf32>
    %cst_19 = arith.constant dense<0.000000e+00> : vector<8x16xf32>
    %66 = tpu.matmul %65, %51, %cst_19 {dimension_numbers = #tpu.dot_dimension_numbers<[1], [0], [0], [1], [0, 0, 1, 1], [], []>} : vector<8x8xf32>, vector<8x16xf32>, vector<8x16xf32> -> vector<8x16xf32>
    %67 = vector.extract_strided_slice %8 {offsets = [8, 16], sizes = [8, 16], strides = [1, 1]} : vector<16x32xf32> to vector<8x16xf32>
    %68 = vector.extract_strided_slice %9 {offsets = [8, 16], sizes = [8, 16], strides = [1, 1]} : vector<16x32xf32> to vector<8x16xf32>
    %69 = vector.extract_strided_slice %10 {offsets = [8, 16], sizes = [8, 16], strides = [1, 1]} : vector<16x32xf32> to vector<8x16xf32>
    %cst_20 = arith.constant dense<0.000000e+00> : vector<8x8xf32>
    %70 = tpu.matmul %67, %68, %cst_20 {dimension_numbers = #tpu.dot_dimension_numbers<[1], [1], [0], [0], [0, 0, 1, 0], [], []>} : vector<8x16xf32>, vector<8x16xf32>, vector<8x8xf32> -> vector<8x8xf32>
    %71 = vector.extract_strided_slice %11 {offsets = [1, 0], sizes = [1, 8], strides = [1, 1]} : vector<2x8xf32> to vector<1x8xf32>
    %72 = vector.broadcast %71 : vector<1x8xf32> to vector<8x8xf32>
    %73 = arith.addf %70, %72 : vector<8x8xf32>
    %cst_21 = arith.constant dense<0xFF800000> : vector<8xf32>
    %74 = vector.multi_reduction <maximumf>, %73, %cst_21 [1] : vector<8x8xf32> to vector<8xf32>
    %75 = vector.shape_cast %74 : vector<8xf32> to vector<8x1xf32>
    %76 = vector.broadcast %75 : vector<8x1xf32> to vector<8x8xf32>
    %77 = arith.subf %73, %76 : vector<8x8xf32>
    %78 = math.exp %77 : vector<8x8xf32>
    %cst_22 = arith.constant dense<0.000000e+00> : vector<8xf32>
    %79 = vector.multi_reduction <add>, %78, %cst_22 [1] : vector<8x8xf32> to vector<8xf32>
    %80 = vector.shape_cast %79 : vector<8xf32> to vector<8x1xf32>
    %81 = tpu.reciprocal %80 {approx = true} : vector<8x1xf32> -> vector<8x1xf32>
    %82 = vector.broadcast %81 : vector<8x1xf32> to vector<8x8xf32>
    %83 = arith.mulf %78, %82 : vector<8x8xf32>
    %cst_23 = arith.constant dense<0.000000e+00> : vector<8x16xf32>
    %84 = tpu.matmul %83, %69, %cst_23 {dimension_numbers = #tpu.dot_dimension_numbers<[1], [0], [0], [1], [0, 0, 1, 1], [], []>} : vector<8x8xf32>, vector<8x16xf32>, vector<8x16xf32> -> vector<8x16xf32>
    %85 = tpu.concatenate %66, %84 in 1 : vector<8x16xf32>, vector<8x16xf32> -> vector<8x32xf32>
    %86 = tpu.concatenate %48, %85 in 0 : vector<8x32xf32>, vector<8x32xf32> -> vector<16x32xf32>
    %c0_24 = arith.constant 0 : index
    %c0_25 = arith.constant 0 : index
    %87 = vector.load %arg4[%c0_24, %c0_25] : memref<32x32xf32, #tpu.memory_space<vmem>>, vector<32x32xf32>
    %cst_26 = arith.constant dense<0.000000e+00> : vector<16x32xf32>
    %88 = tpu.matmul %86, %87, %cst_26 {dimension_numbers = #tpu.dot_dimension_numbers<[1], [0], [0], [1], [0, 0, 1, 1], [], []>} : vector<16x32xf32>, vector<32x32xf32>, vector<16x32xf32> -> vector<16x32xf32>
    %c0_27 = arith.constant 0 : index
    %c0_28 = arith.constant 0 : index
    %89 = vector.load %arg5[%c0_27, %c0_28] : memref<1x32xf32, #tpu.memory_space<vmem>>, vector<1x32xf32>
    %90 = vector.broadcast %89 : vector<1x32xf32> to vector<16x32xf32>
    %91 = arith.addf %88, %90 : vector<16x32xf32>
    %92 = arith.addf %91, %0 : vector<16x32xf32>
    %c0_29 = arith.constant 0 : index
    %c0_30 = arith.constant 0 : index
    %93 = vector.load %arg6[%c0_29, %c0_30] : memref<1x32xf32, #tpu.memory_space<vmem>>, vector<1x32xf32>
    %c0_31 = arith.constant 0 : index
    %c0_32 = arith.constant 0 : index
    %94 = vector.load %arg7[%c0_31, %c0_32] : memref<1x32xf32, #tpu.memory_space<vmem>>, vector<1x32xf32>
    %cst_33 = arith.constant dense<0.000000e+00> : vector<16xf32>
    %95 = vector.multi_reduction <add>, %92, %cst_33 [1] : vector<16x32xf32> to vector<16xf32>
    %96 = vector.shape_cast %95 : vector<16xf32> to vector<16x1xf32>
    %cst_34 = arith.constant 3.200000e+01 : f32
    %97 = vector.broadcast %cst_34 : f32 to vector<16x1xf32>
    %98 = arith.divf %96, %97 : vector<16x1xf32>
    %99 = vector.broadcast %98 : vector<16x1xf32> to vector<16x32xf32>
    %100 = arith.subf %92, %99 : vector<16x32xf32>
    %101 = arith.mulf %100, %100 : vector<16x32xf32>
    %cst_35 = arith.constant dense<0.000000e+00> : vector<16xf32>
    %102 = vector.multi_reduction <add>, %101, %cst_35 [1] : vector<16x32xf32> to vector<16xf32>
    %103 = vector.shape_cast %102 : vector<16xf32> to vector<16x1xf32>
    %cst_36 = arith.constant 3.200000e+01 : f32
    %104 = vector.broadcast %cst_36 : f32 to vector<16x1xf32>
    %105 = arith.divf %103, %104 : vector<16x1xf32>
    %106 = vector.broadcast %98 : vector<16x1xf32> to vector<16x32xf32>
    %107 = arith.subf %92, %106 : vector<16x32xf32>
    %cst_37 = arith.constant 9.99999996E-13 : f32
    %108 = vector.broadcast %cst_37 : f32 to vector<16x1xf32>
    %109 = arith.addf %105, %108 : vector<16x1xf32>
    %110 = math.rsqrt %109 : vector<16x1xf32>
    %111 = vector.broadcast %110 : vector<16x1xf32> to vector<16x32xf32>
    %112 = arith.mulf %107, %111 : vector<16x32xf32>
    %113 = vector.broadcast %93 : vector<1x32xf32> to vector<16x32xf32>
    %114 = arith.mulf %112, %113 : vector<16x32xf32>
    %115 = vector.broadcast %94 : vector<1x32xf32> to vector<16x32xf32>
    %116 = arith.addf %114, %115 : vector<16x32xf32>
    %c0_38 = arith.constant 0 : index
    %c0_39 = arith.constant 0 : index
    %117 = vector.load %arg8[%c0_38, %c0_39] : memref<32x64xf32, #tpu.memory_space<vmem>>, vector<32x64xf32>
    %cst_40 = arith.constant dense<0.000000e+00> : vector<16x64xf32>
    %118 = tpu.matmul %116, %117, %cst_40 {dimension_numbers = #tpu.dot_dimension_numbers<[1], [0], [0], [1], [0, 0, 1, 1], [], []>} : vector<16x32xf32>, vector<32x64xf32>, vector<16x64xf32> -> vector<16x64xf32>
    %c0_41 = arith.constant 0 : index
    %c0_42 = arith.constant 0 : index
    %119 = vector.load %arg9[%c0_41, %c0_42] : memref<1x64xf32, #tpu.memory_space<vmem>>, vector<1x64xf32>
    %120 = vector.broadcast %119 : vector<1x64xf32> to vector<16x64xf32>
    %121 = arith.addf %118, %120 : vector<16x64xf32>
    %cst_43 = arith.constant 5.000000e-01 : f32
    %122 = vector.broadcast %cst_43 : f32 to vector<16x64xf32>
    %123 = arith.mulf %122, %121 : vector<16x64xf32>
    %cst_44 = arith.constant 4.471500e-02 : f32
    %124 = vector.broadcast %cst_44 : f32 to vector<16x64xf32>
    %125 = arith.mulf %124, %121 : vector<16x64xf32>
    %126 = arith.mulf %125, %121 : vector<16x64xf32>
    %127 = arith.mulf %126, %121 : vector<16x64xf32>
    %128 = arith.addf %121, %127 : vector<16x64xf32>
    %cst_45 = arith.constant 0.797884583 : f32
    %129 = vector.broadcast %cst_45 : f32 to vector<16x64xf32>
    %130 = arith.mulf %129, %128 : vector<16x64xf32>
    %131 = math.tanh %130 : vector<16x64xf32>
    %cst_46 = arith.constant 1.000000e+00 : f32
    %132 = vector.broadcast %cst_46 : f32 to vector<16x64xf32>
    %133 = arith.addf %132, %131 : vector<16x64xf32>
    %134 = arith.mulf %123, %133 : vector<16x64xf32>
    %c0_47 = arith.constant 0 : index
    %c0_48 = arith.constant 0 : index
    %135 = vector.load %arg10[%c0_47, %c0_48] : memref<64x32xf32, #tpu.memory_space<vmem>>, vector<64x32xf32>
    %cst_49 = arith.constant dense<0.000000e+00> : vector<16x32xf32>
    %136 = tpu.matmul %134, %135, %cst_49 {dimension_numbers = #tpu.dot_dimension_numbers<[1], [0], [0], [1], [0, 0, 1, 1], [], []>} : vector<16x64xf32>, vector<64x32xf32>, vector<16x32xf32> -> vector<16x32xf32>
    %c0_50 = arith.constant 0 : index
    %c0_51 = arith.constant 0 : index
    %137 = vector.load %arg11[%c0_50, %c0_51] : memref<1x32xf32, #tpu.memory_space<vmem>>, vector<1x32xf32>
    %138 = vector.broadcast %137 : vector<1x32xf32> to vector<16x32xf32>
    %139 = arith.addf %136, %138 : vector<16x32xf32>
    %140 = arith.addf %139, %116 : vector<16x32xf32>
    %c0_52 = arith.constant 0 : index
    %c0_53 = arith.constant 0 : index
    %141 = vector.load %arg12[%c0_52, %c0_53] : memref<1x32xf32, #tpu.memory_space<vmem>>, vector<1x32xf32>
    %c0_54 = arith.constant 0 : index
    %c0_55 = arith.constant 0 : index
    %142 = vector.load %arg13[%c0_54, %c0_55] : memref<1x32xf32, #tpu.memory_space<vmem>>, vector<1x32xf32>
    %cst_56 = arith.constant dense<0.000000e+00> : vector<16xf32>
    %143 = vector.multi_reduction <add>, %140, %cst_56 [1] : vector<16x32xf32> to vector<16xf32>
    %144 = vector.shape_cast %143 : vector<16xf32> to vector<16x1xf32>
    %cst_57 = arith.constant 3.200000e+01 : f32
    %145 = vector.broadcast %cst_57 : f32 to vector<16x1xf32>
    %146 = arith.divf %144, %145 : vector<16x1xf32>
    %147 = vector.broadcast %146 : vector<16x1xf32> to vector<16x32xf32>
    %148 = arith.subf %140, %147 : vector<16x32xf32>
    %149 = arith.mulf %148, %148 : vector<16x32xf32>
    %cst_58 = arith.constant dense<0.000000e+00> : vector<16xf32>
    %150 = vector.multi_reduction <add>, %149, %cst_58 [1] : vector<16x32xf32> to vector<16xf32>
    %151 = vector.shape_cast %150 : vector<16xf32> to vector<16x1xf32>
    %cst_59 = arith.constant 3.200000e+01 : f32
    %152 = vector.broadcast %cst_59 : f32 to vector<16x1xf32>
    %153 = arith.divf %151, %152 : vector<16x1xf32>
    %154 = vector.broadcast %146 : vector<16x1xf32> to vector<16x32xf32>
    %155 = arith.subf %140, %154 : vector<16x32xf32>
    %cst_60 = arith.constant 9.99999996E-13 : f32
    %156 = vector.broadcast %cst_60 : f32 to vector<16x1xf32>
    %157 = arith.addf %153, %156 : vector<16x1xf32>
    %158 = math.rsqrt %157 : vector<16x1xf32>
    %159 = vector.broadcast %158 : vector<16x1xf32> to vector<16x32xf32>
    %160 = arith.mulf %155, %159 : vector<16x32xf32>
    %161 = vector.broadcast %141 : vector<1x32xf32> to vector<16x32xf32>
    %162 = arith.mulf %160, %161 : vector<16x32xf32>
    %163 = vector.broadcast %142 : vector<1x32xf32> to vector<16x32xf32>
    %164 = arith.addf %162, %163 : vector<16x32xf32>
    %c0_61 = arith.constant 0 : index
    %c0_62 = arith.constant 0 : index
    %165 = vector.load %arg14[%c0_61, %c0_62] : memref<16x32xf32, #tpu.memory_space<vmem>>, vector<16x32xf32>
    tpu.vector_store %arg14[%c0_61, %c0_62], %164 {strides = array<i32>} : memref<16x32xf32, #tpu.memory_space<vmem>>, vector<16x32xf32>,
    return
  }
}

</mosaic_0001>

<llo_original>
// kernel: _lambda_.4
$region0: #{_lambda_.4}
  #allocation0 [shape = 'u32[]', space=smem, size = 0x4, offset = 0x4, fixed_abs, tag = 'smem constant byte address 0x4 - core index']
  #allocation1 [shape = 'u32[72,128]{1,0:T(1,128)}', space=vmem, size = 0x9000, scoped, tag = 'internal scratch']
  %s0 = inlined_call_operand.vmem [shape: f32[16,32], index: 0, kind: input, shape index: {}]
  %s1 = inlined_call_operand.vmem [shape: f32[1,32], index: 1, kind: input, shape index: {}]
  %s2 = inlined_call_operand.vmem [shape: f32[1,32], index: 2, kind: input, shape index: {}]
  %s3 = inlined_call_operand.vmem [shape: f32[16,32], index: 3, kind: output, shape index: {}]
  %s4 = sld [smem:[#allocation0]]
  $region22: #{_lambda_.4} parent=0
    _
  %s6 = ssub.s32 1, %s4
  %s7 = scalar_select 0, %s6, %s4
  // Predicated region
  $region2: #{_lambda_.4} parent=0 // pred_check
    _
  $region3: #{_lambda_.4} parent=0 // pred_check_branch
    %9 = sbr.rel (0) target = $region5
  $region4: #{_lambda_.4} parent=0 // pred_region
    _
  $region5: #{_lambda_.4} parent=0 // pred_fallthru
    _
  // Predicated region
  $region6: #{_lambda_.4} parent=0 // pred_check
    _
  $region7: #{_lambda_.4} parent=0 // pred_check_branch
    %11 = sbr.rel (0) target = $region9
  $region8: #{_lambda_.4} parent=0 // pred_region
    _
  $region9: #{_lambda_.4} parent=0 // pred_fallthru
    _
  // Predicated region
  $region10: #{_lambda_.4} parent=0 // pred_check
    _
  $region11: #{_lambda_.4} parent=0 // pred_check_branch
    %13 = sbr.rel (0) target = $region13
  $region12: #{_lambda_.4} parent=0 // pred_region
    _
  $region13: #{_lambda_.4} parent=0 // pred_fallthru
    _
  %v14 = vld [vmem:[%s0] sm:$0xff]
  %v15 = vld [vmem:[%s0 + $0x8] sm:$0xff]
  %v16 = vld [vmem:[%s1] sm:$0x1]
  %v17 = vld [vmem:[%s2] sm:$0x1]
  %vm18 = vcmask 261120
  %v19 = vsel %vm18, %v14, 0.0
  %20 = vadd.xlane.f32.xlu0 %v19
  %v21 = vpop.xlane.xlu0 %20
  %v22 = vsel %vm18, %v15, 0.0
  %23 = vadd.xlane.f32.xlu0 %v22
  %v24 = vpop.xlane.xlu0 %23
  %v25 = vrcp.pop 32.0
  %v26 = vmul.f32 32.0, %v25
  %v27 = vsub.f32 1.0, %v26
  %v28 = vmul.f32 %v25, %v27
  %v29 = vadd.f32 %v25, %v28
  %vm30 = vweird.f32 %v25
  %v31 = vsel %vm30, %v25, %v29
  %v32 = vmul.f32 %v21, %v31
  %v33 = vmul.f32 %v24, %v31
  %v34 = vsub.f32 %v14, %v32
  %v35 = vsub.f32 %v15, %v33
  %v36 = vmul.f32 %v34, %v34
  %v37 = vmul.f32 %v35, %v35
  %v38 = vsel %vm18, %v36, 0.0
  %39 = vadd.xlane.f32.xlu0 %v38
  %v40 = vpop.xlane.xlu0 %39
  %v41 = vsel %vm18, %v37, 0.0
  %42 = vadd.xlane.f32.xlu0 %v41
  %v43 = vpop.xlane.xlu0 %42
  %v44 = vmul.f32 %v40, %v31
  %v45 = vmul.f32 %v43, %v31
  %v46 = vadd.f32 %v44, 1e-12
  %v47 = vadd.f32 %v45, 1e-12
  %v48 = vrsqrt.pop %v46
  %v49 = vmul.f32 %v48, %v46
  %v50 = vmul.f32 %v49, %v48
  %v51 = vmul.f32 0.5, %v50
  %v52 = vsub.f32 1.5, %v51
  %v53 = vmul.f32 %v48, %v52
  %vm54 = vweird.f32 %v46
  %vm55 = vweird.f32 %v48
  %vm56 = vmor %vm54, %vm55
  %v57 = vsel %vm56, %v48, %v53
  %v58 = vrsqrt.pop %v47
  %v59 = vmul.f32 %v58, %v47
  %v60 = vmul.f32 %v59, %v58
  %v61 = vmul.f32 0.5, %v60
  %v62 = vsub.f32 1.5, %v61
  %v63 = vmul.f32 %v58, %v62
  %vm64 = vweird.f32 %v47
  %vm65 = vweird.f32 %v58
  %vm66 = vmor %vm64, %vm65
  %v67 = vsel %vm66, %v58, %v63
  %v68 = vmul.f32 %v34, %v57
  %v69 = vmul.f32 %v35, %v67
  %v71 = vperm.slane %v16, 0
  %v73 = vmul.f32 %v68, %v71
  %v74 = vmul.f32 %v69, %v71
  %v76 = vperm.slane %v17, 0
  %v78 = vadd.f32 %v73, %v76
  %v79 = vadd.f32 %v74, %v76
  %80 = vst.msk [vmem:[%s3] sm:$0xff] %vm18, %v78
  %81 = vst.msk [vmem:[%s3 + $0x8] sm:$0xff] %vm18, %v79
  // Predicated region
  $region14: #{_lambda_.4} parent=0 // pred_check
    _
  $region15: #{_lambda_.4} parent=0 // pred_check_branch
    %83 = sbr.rel (0) target = $region17
  $region16: #{_lambda_.4} parent=0 // pred_region
    _
  $region17: #{_lambda_.4} parent=0 // pred_fallthru
    _
  // Predicated region
  $region18: #{_lambda_.4} parent=0 // pred_check
    _
  $region19: #{_lambda_.4} parent=0 // pred_check_branch
    %85 = sbr.rel (0) target = $region21
  $region20: #{_lambda_.4} parent=0 // pred_region
    _
  $region21: #{_lambda_.4} parent=0 // pred_fallthru
    _

// kernel: _lambda_.7
$region0: #{_lambda_.7}
  #allocation0 [shape = 'u32[]', space=smem, size = 0x4, offset = 0x4, fixed_abs, tag = 'smem constant byte address 0x4 - core index']
  #allocation1 [shape = 'u32[72,128]{1,0:T(1,128)}', space=vmem, size = 0x9000, scoped, tag = 'internal scratch']
  %s0 = inlined_call_operand.vmem [shape: f32[16,32], index: 0, kind: input, shape index: {}]
  %s1 = inlined_call_operand.vmem [shape: f32[32,32], index: 1, kind: input, shape index: {}]
  %s2 = inlined_call_operand.vmem [shape: f32[1,32], index: 2, kind: input, shape index: {}]
  %s3 = inlined_call_operand.hbm [shape: f32[32,10], index: 3, kind: input, shape index: {}]
  %s4 = inlined_call_operand.vmem [shape: f32[1,10], index: 4, kind: input, shape index: {}]
  %s5 = inlined_call_operand.hbm [shape: f32[2,10], index: 5, kind: output, shape index: {}]
  %s6 = sld [smem:[#allocation0]]
  $region34: #{_lambda_.7} parent=0
    _
  %s8 = ssub.s32 1, %s6
  %s9 = scalar_select 0, %s8, %s6
  $region1: #{_lambda_.7} parent=0
    #allocation2 [shape = 'u8[16384]{0}', space=vmem, size = 0x4000, scoped, tag = 'input window, operand 3, single buffered']
    #allocation3 [shape = 's32[1]{0}', space=sflag, size = 0x4, scoped, tag = 'scoped memory for _lambda_.7']
    #allocation4 [shape = 's32[1]{0}', space=sflag, size = 0x4, scoped, tag = 'scoped memory for _lambda_.7']
    #allocation5 [shape = 'u8[1024]{0}', space=vmem, size = 0x400, scoped, tag = 'output window, operand 0, single buffered']
    %10 = vsyncpa [#allocation3], 0
    %11 = vsyncpa [#allocation4], 0
    // Predicated region
    $region2: #{_lambda_.7} parent=1 // pred_check
      _
    $region3: #{_lambda_.7} parent=1 // pred_check_branch
      %13 = sbr.rel (0) target = $region5
    $region4: #{_lambda_.7} parent=1 // pred_region
      _
    $region5: #{_lambda_.7} parent=1 // pred_fallthru
      _
    // Predicated region
    $region6: #{_lambda_.7} parent=1 // pred_check
      _
    $region7: #{_lambda_.7} parent=1 // pred_check_branch
      %15 = sbr.rel (0) target = $region9
    $region8: #{_lambda_.7} parent=1 // pred_region
      _
    $region9: #{_lambda_.7} parent=1 // pred_fallthru
      _
    // Predicated region
    $region10: #{_lambda_.7} parent=1 // pred_check
      _
    $region11: #{_lambda_.7} parent=1 // pred_check_branch
      %17 = sbr.rel (0) target = $region13
    $region12: #{_lambda_.7} parent=1 // pred_region
      _
    $region13: #{_lambda_.7} parent=1 // pred_fallthru
      _
    // Predicated region
    $region14: #{_lambda_.7} parent=1 // pred_check
      _
    $region15: #{_lambda_.7} parent=1 // pred_check_branch
      %19 = sbr.rel (0) target = $region17
    $region16: #{_lambda_.7} parent=1 // pred_region
      %21 = vsyncadd [#allocation3], 0
      %s22 = sshll.u32 %s3, 4
      %s23 = int_to_ptr.hbm [resolvable:$true] %s22
      %s24 = sshll.u32 [#allocation2], 4
      %s25 = int_to_ptr.vmem [resolvable:$true] %s24
      %30 = dma.hbm_to_vmem [thread:$0]  %s23, 512, %s25, [#allocation3], 128, 128, 8
    $region17: #{_lambda_.7} parent=1 // pred_fallthru
      _
    // Predicated region
    $region18: #{_lambda_.7} parent=1 // pred_check
      _
    $region19: #{_lambda_.7} parent=1 // pred_check_branch
      %32 = sbr.rel (0) target = $region21
    $region20: #{_lambda_.7} parent=1 // pred_region
      _
    $region21: #{_lambda_.7} parent=1 // pred_fallthru
      _
    // Predicated region
    $region22: #{_lambda_.7} parent=1 // pred_check
      _
    $region23: #{_lambda_.7} parent=1 // pred_check_branch
      %34 = sbr.rel (0) target = $region25
    $region24: #{_lambda_.7} parent=1 // pred_region
      %36 = dma.done [#allocation3], 512
    $region25: #{_lambda_.7} parent=1 // pred_fallthru
      _
    %v37 = vld [vmem:[%s0] sm:$0xff]
    %v38 = vld [vmem:[%s0 + $0x8] sm:$0xff]
    %v40 = vrot.slane %v38, 7
    %vm42 = vcmask 1040384
    %v43 = vsel %vm42, %v37, %v40
    %v44 = vld [vmem:[%s1] sm:$0xff]
    %v45 = vld [vmem:[%s1 + $0x8] sm:$0xff]
    %v46 = vld [vmem:[%s1 + $0x10] sm:$0xff]
    %v47 = vld [vmem:[%s1 + $0x18] sm:$0xff]
    %v48 = vld [vmem:[%s2] sm:$0x1]
    %v50 = vperm.slane %v48, 0
    %vm52 = vcmask 261120
    %v54 = vsel %vm52, %v43, 0
    %56 = vmatpush.msra.mxu0 0.0
    %57 = vmatpush.msra.mxu0 0.0
    %58 = vmatpush.msra.mxu0 0.0
    %59 = vmatpush.msra.mxu0 0.0
    %60 = vmatpush.msra.mxu0 0.0
    %61 = vmatpush.msra.mxu0 0.0
    %62 = vmatpush.msra.mxu0 0.0
    %63 = vmatpush.msra.mxu0 0.0
    %64 = vmatpush.msra.mxu0 0.0
    %65 = vmatpush.msra.mxu0 0.0
    %66 = vmatpush.msra.mxu0 0.0
    %67 = vmatpush.msra.mxu0 0.0
    %68 = vmatpush.msra.mxu0 %v47
    %69 = vmatpush.msra.mxu0 %v46
    %70 = vmatpush.msra.mxu0 %v45
    %71 = vmatpush.msra.mxu0 %v44
    %72 = vmatmul.f32.gmra.mxu0 %v54
    %v73 = vpop.f32.mrf.mxu0
    %v74 = vadd.f32 %v50, %v73
    %75 = vdwg.mxu0
    %v76 = vtanh.pop %v74
    %v77 = vld [vmem:[#allocation2] sm:$0xff]
    %v78 = vld [vmem:[#allocation2 + $0x8] sm:$0xff]
    %v79 = vld [vmem:[#allocation2 + $0x10] sm:$0xff]
    %v80 = vld [vmem:[#allocation2 + $0x18] sm:$0xff]
    %v81 = vld [vmem:[%s4] sm:$0x1]
    %v83 = vperm.slane %v81, 0
    %v86 = vsel %vm52, %v76, 0
    %88 = vmatpush.msra.mxu0 0.0
    %89 = vmatpush.msra.mxu0 0.0
    %90 = vmatpush.msra.mxu0 0.0
    %91 = vmatpush.msra.mxu0 0.0
    %92 = vmatpush.msra.mxu0 0.0
    %93 = vmatpush.msra.mxu0 0.0
    %94 = vmatpush.msra.mxu0 0.0
    %95 = vmatpush.msra.mxu0 0.0
    %96 = vmatpush.msra.mxu0 0.0
    %97 = vmatpush.msra.mxu0 0.0
    %98 = vmatpush.msra.mxu0 0.0
    %99 = vmatpush.msra.mxu0 0.0
    %100 = vmatpush.msra.mxu0 %v80
    %101 = vmatpush.msra.mxu0 %v79
    %102 = vmatpush.msra.mxu0 %v78
    %103 = vmatpush.msra.mxu0 %v77
    %104 = vmatmul.f32.gmra.mxu0 %v86
    %v105 = vpop.f32.mrf.mxu0
    %v106 = vadd.f32 %v83, %v105
    %107 = vdwg.mxu0
    %vm108 = vcmask 74752
    %109 = vst.msk [vmem:[#allocation5] sm:$0x3] %vm108, %v106
    // Predicated region
    $region26: #{_lambda_.7} parent=1 // pred_check
      _
    $region27: #{_lambda_.7} parent=1 // pred_check_branch
      %111 = sbr.rel (0) target = $region29
    $region28: #{_lambda_.7} parent=1 // pred_region
      %113 = vsyncadd [#allocation4], 0
      %s115 = sshll.u32 [#allocation5], 4
      %s116 = int_to_ptr.vmem [resolvable:$true] %s115
      %s117 = sshll.u32 %s5, 4
      %s118 = int_to_ptr.hbm [resolvable:$true] %s117
      %120 = dma.vmem_to_hbm [thread:$0]  %s116, 32, %s118, [#allocation4]
    $region29: #{_lambda_.7} parent=1 // pred_fallthru
      _
    // Predicated region
    $region30: #{_lambda_.7} parent=1 // pred_check
      _
    $region31: #{_lambda_.7} parent=1 // pred_check_branch
      %122 = sbr.rel (0) target = $region33
    $region32: #{_lambda_.7} parent=1 // pred_region
      %124 = dma.done [#allocation4], 32
    $region33: #{_lambda_.7} parent=1 // pred_fallthru
      _
    %125 = vsyncpa [#allocation3], 1
    %126 = vsyncpa [#allocation4], 1

// kernel: _lambda_.5
$region0: #{_lambda_.5}
  #allocation0 [shape = 'u32[]', space=smem, size = 0x4, offset = 0x4, fixed_abs, tag = 'smem constant byte address 0x4 - core index']
  #allocation1 [shape = 'u32[72,128]{1,0:T(1,128)}', space=vmem, size = 0x9000, scoped, tag = 'internal scratch']
  %s0 = inlined_call_operand.vmem [shape: f32[16,32], index: 0, kind: input, shape index: {}]
  %s1 = inlined_call_operand.vmem [shape: f32[2,8], index: 1, kind: input, shape index: {}]
  %s2 = inlined_call_operand.hbm [shape: f32[32,96], index: 2, kind: input, shape index: {}]
  %s3 = inlined_call_operand.vmem [shape: f32[1,96], index: 3, kind: input, shape index: {}]
  %s4 = inlined_call_operand.hbm [shape: f32[32,32], index: 4, kind: input, shape index: {}]
  %s5 = inlined_call_operand.vmem [shape: f32[1,32], index: 5, kind: input, shape index: {}, may-alias: {5,7,11,13}]
  %s6 = inlined_call_operand.vmem [shape: f32[1,32], index: 6, kind: input, shape index: {}, may-alias: {6,12}]
  %s7 = inlined_call_operand.vmem [shape: f32[1,32], index: 7, kind: input, shape index: {}, may-alias: {5,7,11,13}]
  %s8 = inlined_call_operand.hbm [shape: f32[32,64], index: 8, kind: input, shape index: {}]
  %s9 = inlined_call_operand.vmem [shape: f32[1,64], index: 9, kind: input, shape index: {}]
  %s10 = inlined_call_operand.vmem [shape: f32[64,32], index: 10, kind: input, shape index: {}]
  %s11 = inlined_call_operand.vmem [shape: f32[1,32], index: 11, kind: input, shape index: {}, may-alias: {5,7,11,13}]
  %s12 = inlined_call_operand.vmem [shape: f32[1,32], index: 12, kind: input, shape index: {}, may-alias: {6,12}]
  %s13 = inlined_call_operand.vmem [shape: f32[1,32], index: 13, kind: input, shape index: {}, may-alias: {5,7,11,13}]
  %s14 = inlined_call_operand.vmem [shape: f32[16,32], index: 14, kind: output, shape index: {}]
  %s15 = sld [smem:[#allocation0]]
  $region78: #{_lambda_.5} parent=0
    _
  %s17 = ssub.s32 1, %s15
  %s18 = scalar_select 0, %s17, %s15
  $region1: #{_lambda_.5} parent=0
    #allocation2 [shape = 'u8[16384]{0}', space=vmem, size = 0x4000, scoped, tag = 'input window, operand 2, single buffered']
    #allocation3 [shape = 's32[1]{0}', space=sflag, size = 0x4, scoped, tag = 'scoped memory for _lambda_.5']
    #allocation4 [shape = 'u8[16384]{0}', space=vmem, size = 0x4000, scoped, tag = 'input window, operand 4, single buffered']
    #allocation5 [shape = 's32[1]{0}', space=sflag, size = 0x4, scoped, tag = 'scoped memory for _lambda_.5']
    #allocation6 [shape = 'u8[16384]{0}', space=vmem, size = 0x4000, scoped, tag = 'input window, operand 8, single buffered']
    %19 = vsyncpa [#allocation3], 0
    %20 = vsyncpa [#allocation5], 0
    // Predicated region
    $region2: #{_lambda_.5} parent=1 // pred_check
      _
    $region3: #{_lambda_.5} parent=1 // pred_check_branch
      %22 = sbr.rel (0) target = $region5
    $region4: #{_lambda_.5} parent=1 // pred_region
      _
    $region5: #{_lambda_.5} parent=1 // pred_fallthru
      _
    // Predicated region
    $region6: #{_lambda_.5} parent=1 // pred_check
      _
    $region7: #{_lambda_.5} parent=1 // pred_check_branch
      %24 = sbr.rel (0) target = $region9
    $region8: #{_lambda_.5} parent=1 // pred_region
      _
    $region9: #{_lambda_.5} parent=1 // pred_fallthru
      _
    // Predicated region
    $region10: #{_lambda_.5} parent=1 // pred_check
      _
    $region11: #{_lambda_.5} parent=1 // pred_check_branch
      %26 = sbr.rel (0) target = $region13
    $region12: #{_lambda_.5} parent=1 // pred_region
      %28 = vsyncadd [#allocation3], 0
      %s29 = sshll.u32 %s2, 4
      %s30 = int_to_ptr.hbm [resolvable:$true] %s29
      %s31 = sshll.u32 [#allocation2], 4
      %s32 = int_to_ptr.vmem [resolvable:$true] %s31
      %37 = dma.hbm_to_vmem [thread:$0]  %s30, 512, %s32, [#allocation3], 128, 128, 8
    $region13: #{_lambda_.5} parent=1 // pred_fallthru
      _
    // Predicated region
    $region14: #{_lambda_.5} parent=1 // pred_check
      _
    $region15: #{_lambda_.5} parent=1 // pred_check_branch
      %39 = sbr.rel (0) target = $region17
    $region16: #{_lambda_.5} parent=1 // pred_region
      _
    $region17: #{_lambda_.5} parent=1 // pred_fallthru
      _
    // Predicated region
    $region18: #{_lambda_.5} parent=1 // pred_check
      _
    $region19: #{_lambda_.5} parent=1 // pred_check_branch
      %41 = sbr.rel (0) target = $region21
    $region20: #{_lambda_.5} parent=1 // pred_region
      %43 = vsyncadd [#allocation5], 0
      %s44 = sshll.u32 %s4, 4
      %s45 = int_to_ptr.hbm [resolvable:$true] %s44
      %s46 = sshll.u32 [#allocation4], 4
      %s47 = int_to_ptr.vmem [resolvable:$true] %s46
      %52 = dma.hbm_to_vmem [thread:$0]  %s45, 512, %s47, [#allocation5], 128, 128, 8
    $region21: #{_lambda_.5} parent=1 // pred_fallthru
      _
    // Predicated region
    $region22: #{_lambda_.5} parent=1 // pred_check
      _
    $region23: #{_lambda_.5} parent=1 // pred_check_branch
      %54 = sbr.rel (0) target = $region25
    $region24: #{_lambda_.5} parent=1 // pred_region
      _
    $region25: #{_lambda_.5} parent=1 // pred_fallthru
      _
    // Predicated region
    $region26: #{_lambda_.5} parent=1 // pred_check
      _
    $region27: #{_lambda_.5} parent=1 // pred_check_branch
      %56 = sbr.rel (0) target = $region29
    $region28: #{_lambda_.5} parent=1 // pred_region
      _
    $region29: #{_lambda_.5} parent=1 // pred_fallthru
      _
    // Predicated region
    $region30: #{_lambda_.5} parent=1 // pred_check
      _
    $region31: #{_lambda_.5} parent=1 // pred_check_branch
      %58 = sbr.rel (0) target = $region33
    $region32: #{_lambda_.5} parent=1 // pred_region
      _
    $region33: #{_lambda_.5} parent=1 // pred_fallthru
      _
    // Predicated region
    $region34: #{_lambda_.5} parent=1 // pred_check
      _
    $region35: #{_lambda_.5} parent=1 // pred_check_branch
      %60 = sbr.rel (0) target = $region37
    $region36: #{_lambda_.5} parent=1 // pred_region
      %62 = vsyncadd [#allocation5], 0
      %s63 = sshll.u32 %s8, 4
      %s64 = int_to_ptr.hbm [resolvable:$true] %s63
      %s65 = sshll.u32 [#allocation6], 4
      %s66 = int_to_ptr.vmem [resolvable:$true] %s65
      %71 = dma.hbm_to_vmem [thread:$0]  %s64, 512, %s66, [#allocation5], 128, 128, 8
    $region37: #{_lambda_.5} parent=1 // pred_fallthru
      _
    // Predicated region
    $region38: #{_lambda_.5} parent=1 // pred_check
      _
    $region39: #{_lambda_.5} parent=1 // pred_check_branch
      %73 = sbr.rel (0) target = $region41
    $region40: #{_lambda_.5} parent=1 // pred_region
      _
    $region41: #{_lambda_.5} parent=1 // pred_fallthru
      _
    // Predicated region
    $region42: #{_lambda_.5} parent=1 // pred_check
      _
    $region43: #{_lambda_.5} parent=1 // pred_check_branch
      %75 = sbr.rel (0) target = $region45
    $region44: #{_lambda_.5} parent=1 // pred_region
      _
    $region45: #{_lambda_.5} parent=1 // pred_fallthru
      _
    // Predicated region
    $region46: #{_lambda_.5} parent=1 // pred_check
      _
    $region47: #{_lambda_.5} parent=1 // pred_check_branch
      %77 = sbr.rel (0) target = $region49
    $region48: #{_lambda_.5} parent=1 // pred_region
      _
    $region49: #{_lambda_.5} parent=1 // pred_fallthru
      _
    // Predicated region
    $region50: #{_lambda_.5} parent=1 // pred_check
      _
    $region51: #{_lambda_.5} parent=1 // pred_check_branch
      %79 = sbr.rel (0) target = $region53
    $region52: #{_lambda_.5} parent=1 // pred_region
      _
    $region53: #{_lambda_.5} parent=1 // pred_fallthru
      _
    // Predicated region
    $region54: #{_lambda_.5} parent=1 // pred_check
      _
    $region55: #{_lambda_.5} parent=1 // pred_check_branch
      %81 = sbr.rel (0) target = $region57
    $region56: #{_lambda_.5} parent=1 // pred_region
      _
    $region57: #{_lambda_.5} parent=1 // pred_fallthru
      _
    // Predicated region
    $region58: #{_lambda_.5} parent=1 // pred_check
      _
    $region59: #{_lambda_.5} parent=1 // pred_check_branch
      %83 = sbr.rel (0) target = $region61
    $region60: #{_lambda_.5} parent=1 // pred_region
      %85 = dma.done [#allocation3], 512
    $region61: #{_lambda_.5} parent=1 // pred_fallthru
      _
    // Predicated region
    $region62: #{_lambda_.5} parent=1 // pred_check
      _
    $region63: #{_lambda_.5} parent=1 // pred_check_branch
      %87 = sbr.rel (0) target = $region65
    $region64: #{_lambda_.5} parent=1 // pred_region
      %89 = dma.done [#allocation5], 512
    $region65: #{_lambda_.5} parent=1 // pred_fallthru
      _
    // Predicated region
    $region66: #{_lambda_.5} parent=1 // pred_check
      _
    $region67: #{_lambda_.5} parent=1 // pred_check_branch
      %91 = sbr.rel (0) target = $region69
    $region68: #{_lambda_.5} parent=1 // pred_region
      %93 = dma.done [#allocation5], 512
    $region69: #{_lambda_.5} parent=1 // pred_fallthru
      _
    %v94 = vld [vmem:[%s0] sm:$0xff]
    %v95 = vld [vmem:[%s0 + $0x8] sm:$0xff]
    %v96 = vld [vmem:[#allocation2] sm:$0xff]
    %v97 = vld [vmem:[#allocation2 + $0x8] sm:$0xff]
    %v98 = vld [vmem:[#allocation2 + $0x10] sm:$0xff]
    %v99 = vld [vmem:[#allocation2 + $0x18] sm:$0xff]
    %v100 = vld [vmem:[%s3] sm:$0x1]
    %v102 = vperm.slane %v100, 0
    %vm104 = vcmask 261120
    %v106 = vsel %vm104, %v94, 0
    %v109 = vsel %vm104, %v95, 0
    %111 = vmatpush.msra.mxu0 0.0
    %112 = vmatpush.msra.mxu0 0.0
    %113 = vmatpush.msra.mxu0 0.0
    %114 = vmatpush.msra.mxu0 0.0
    %115 = vmatpush.msra.mxu0 0.0
    %116 = vmatpush.msra.mxu0 0.0
    %117 = vmatpush.msra.mxu0 0.0
    %118 = vmatpush.msra.mxu0 0.0
    %119 = vmatpush.msra.mxu0 0.0
    %120 = vmatpush.msra.mxu0 0.0
    %121 = vmatpush.msra.mxu0 0.0
    %122 = vmatpush.msra.mxu0 0.0
    %123 = vmatpush.msra.mxu0 %v99
    %124 = vmatpush.msra.mxu0 %v98
    %125 = vmatpush.msra.mxu0 %v97
    %126 = vmatpush.msra.mxu0 %v96
    %127 = vmatmul.f32.gmra.mxu0 %v106
    %v128 = vpop.f32.mrf.mxu0
    %v129 = vadd.f32 %v102, %v128
    %130 = vmatmul.f32.gmra.mxu0 %v109
    %v131 = vpop.f32.mrf.mxu0
    %v132 = vadd.f32 %v102, %v131
    %133 = vdwg.mxu0
    %v134 = vmul.f32 %v129, 0.25
    %v135 = vmul.f32 %v132, 0.25
    %v136 = vld [vmem:[%s1] sm:$0x3]
    %v137 = vperm.slane %v136, 0
    %139 = vrot.lane.b32.xlu0 %v129, 96
    %v140 = vpop.permute.xlu0 %139
    %vm141 = vcmask 130048
    %v143 = vsel %vm141, %v134, 0
    %v145 = vsel %vm141, %v140, 0
    %147 = vmatpush.xpose.msra.mxu0 0.0
    %148 = vmatpush.xpose.msra.mxu0 0.0
    %149 = vmatpush.xpose.msra.mxu0 0.0
    %150 = vmatpush.xpose.msra.mxu0 0.0
    %151 = vmatpush.xpose.msra.mxu0 0.0
    %152 = vmatpush.xpose.msra.mxu0 0.0
    %153 = vmatpush.xpose.msra.mxu0 0.0
    %154 = vmatpush.xpose.msra.mxu0 0.0
    %155 = vmatpush.xpose.msra.mxu0 0.0
    %156 = vmatpush.xpose.msra.mxu0 0.0
    %157 = vmatpush.xpose.msra.mxu0 0.0
    %158 = vmatpush.xpose.msra.mxu0 0.0
    %159 = vmatpush.xpose.msra.mxu0 0.0
    %160 = vmatpush.xpose.msra.mxu0 0.0
    %161 = vmatpush.xpose.msra.mxu0 0.0
    %162 = vmatpush.xpose.msra.mxu0 %v145
    %163 = vmatmul.f32.gmra.mxu0 %v143
    %v164 = vpop.f32.mrf.mxu0
    %v165 = vadd.f32 %v137, %v164
    %166 = vdwg.mxu0
    %vm167 = vcmask 64512
    %v168 = vsel %vm167, %v165, -inf
    %169 = vmax.xlane.f32.xlu0 %v168
    %v170 = vpop.xlane.xlu0 %169
    %v171 = vsub.f32 %v165, %v170
    %v172 = vmul.f32 %v171, 1.442695
    %v173 = vpow.pop %v172
    %v174 = vsel %vm167, %v173, 0.0
    %175 = vadd.xlane.f32.xlu0 %v174
    %v176 = vpop.xlane.xlu0 %175
    %v177 = vrcp.pop %v176
    %v178 = vmul.f32 %v173, %v177
    %179 = vrot.lane.b32.xlu0 %v129, 64
    %v180 = vpop.permute.xlu0 %179
    %v183 = vsel %vm167, %v178, 0
    %185 = vmatpush.msra.mxu0 0.0
    %186 = vmatpush.msra.mxu0 0.0
    %187 = vmatpush.msra.mxu0 0.0
    %188 = vmatpush.msra.mxu0 0.0
    %189 = vmatpush.msra.mxu0 0.0
    %190 = vmatpush.msra.mxu0 0.0
    %191 = vmatpush.msra.mxu0 0.0
    %192 = vmatpush.msra.mxu0 0.0
    %193 = vmatpush.msra.mxu0 0.0
    %194 = vmatpush.msra.mxu0 0.0
    %195 = vmatpush.msra.mxu0 0.0
    %196 = vmatpush.msra.mxu0 0.0
    %197 = vmatpush.msra.mxu0 0.0
    %198 = vmatpush.msra.mxu0 0.0
    %199 = vmatpush.msra.mxu0 0.0
    %200 = vmatpush.msra.mxu0 %v180
    %201 = vmatmul.f32.gmra.mxu0 %v183
    %v202 = vpop.f32.mrf.mxu0
    %v203 = vadd.f32 0.0, %v202
    %204 = vdwg.mxu0
    %205 = vrot.lane.b32.xlu0 %v134, 112
    %v206 = vpop.permute.xlu0 %205
    %207 = vrot.lane.b32.xlu0 %v129, 80
    %v208 = vpop.permute.xlu0 %207
    %v209 = vsel %vm141, %v206, 0
    %v211 = vsel %vm141, %v208, 0
    %213 = vmatpush.xpose.msra.mxu0 0.0
    %214 = vmatpush.xpose.msra.mxu0 0.0
    %215 = vmatpush.xpose.msra.mxu0 0.0
    %216 = vmatpush.xpose.msra.mxu0 0.0
    %217 = vmatpush.xpose.msra.mxu0 0.0
    %218 = vmatpush.xpose.msra.mxu0 0.0
    %219 = vmatpush.xpose.msra.mxu0 0.0
    %220 = vmatpush.xpose.msra.mxu0 0.0
    %221 = vmatpush.xpose.msra.mxu0 0.0
    %222 = vmatpush.xpose.msra.mxu0 0.0
    %223 = vmatpush.xpose.msra.mxu0 0.0
    %224 = vmatpush.xpose.msra.mxu0 0.0
    %225 = vmatpush.xpose.msra.mxu0 0.0
    %226 = vmatpush.xpose.msra.mxu0 0.0
    %227 = vmatpush.xpose.msra.mxu0 0.0
    %228 = vmatpush.xpose.msra.mxu0 %v211
    %229 = vmatmul.f32.gmra.mxu0 %v209
    %v230 = vpop.f32.mrf.mxu0
    %v231 = vadd.f32 %v137, %v230
    %232 = vdwg.mxu0
    %v233 = vsel %vm167, %v231, -inf
    %234 = vmax.xlane.f32.xlu0 %v233
    %v235 = vpop.xlane.xlu0 %234
    %v236 = vsub.f32 %v231, %v235
    %v237 = vmul.f32 %v236, 1.442695
    %v238 = vpow.pop %v237
    %v239 = vsel %vm167, %v238, 0.0
    %240 = vadd.xlane.f32.xlu0 %v239
    %v241 = vpop.xlane.xlu0 %240
    %v242 = vrcp.pop %v241
    %v243 = vmul.f32 %v238, %v242
    %244 = vrot.lane.b32.xlu0 %v129, 48
    %v245 = vpop.permute.xlu0 %244
    %v248 = vsel %vm167, %v243, 0
    %250 = vmatpush.msra.mxu0 0.0
    %251 = vmatpush.msra.mxu0 0.0
    %252 = vmatpush.msra.mxu0 0.0
    %253 = vmatpush.msra.mxu0 0.0
    %254 = vmatpush.msra.mxu0 0.0
    %255 = vmatpush.msra.mxu0 0.0
    %256 = vmatpush.msra.mxu0 0.0
    %257 = vmatpush.msra.mxu0 0.0
    %258 = vmatpush.msra.mxu0 0.0
    %259 = vmatpush.msra.mxu0 0.0
    %260 = vmatpush.msra.mxu0 0.0
    %261 = vmatpush.msra.mxu0 0.0
    %262 = vmatpush.msra.mxu0 0.0
    %263 = vmatpush.msra.mxu0 0.0
    %264 = vmatpush.msra.mxu0 0.0
    %265 = vmatpush.msra.mxu0 %v245
    %266 = vmatmul.f32.gmra.mxu0 %v248
    %v267 = vpop.f32.mrf.mxu0
    %v268 = vadd.f32 0.0, %v267
    %269 = vdwg.mxu0
    %271 = vrot.lane.b32.xlu0 %v268, 16
    %v272 = vpop.permute.xlu0 %271
    %v274 = vsel %vm141, %v203, %v272
    %v275 = vperm.slane %v136, 1
    %277 = vrot.lane.b32.xlu0 %v132, 96
    %v278 = vpop.permute.xlu0 %277
    %v280 = vsel %vm141, %v135, 0
    %v282 = vsel %vm141, %v278, 0
    %284 = vmatpush.xpose.msra.mxu0 0.0
    %285 = vmatpush.xpose.msra.mxu0 0.0
    %286 = vmatpush.xpose.msra.mxu0 0.0
    %287 = vmatpush.xpose.msra.mxu0 0.0
    %288 = vmatpush.xpose.msra.mxu0 0.0
    %289 = vmatpush.xpose.msra.mxu0 0.0
    %290 = vmatpush.xpose.msra.mxu0 0.0
    %291 = vmatpush.xpose.msra.mxu0 0.0
    %292 = vmatpush.xpose.msra.mxu0 0.0
    %293 = vmatpush.xpose.msra.mxu0 0.0
    %294 = vmatpush.xpose.msra.mxu0 0.0
    %295 = vmatpush.xpose.msra.mxu0 0.0
    %296 = vmatpush.xpose.msra.mxu0 0.0
    %297 = vmatpush.xpose.msra.mxu0 0.0
    %298 = vmatpush.xpose.msra.mxu0 0.0
    %299 = vmatpush.xpose.msra.mxu0 %v282
    %300 = vmatmul.f32.gmra.mxu0 %v280
    %v301 = vpop.f32.mrf.mxu0
    %v302 = vadd.f32 %v275, %v301
    %303 = vdwg.mxu0
    %v304 = vsel %vm167, %v302, -inf
    %305 = vmax.xlane.f32.xlu0 %v304
    %v306 = vpop.xlane.xlu0 %305
    %v307 = vsub.f32 %v302, %v306
    %v308 = vmul.f32 %v307, 1.442695
    %v309 = vpow.pop %v308
    %v310 = vsel %vm167, %v309, 0.0
    %311 = vadd.xlane.f32.xlu0 %v310
    %v312 = vpop.xlane.xlu0 %311
    %v313 = vrcp.pop %v312
    %v314 = vmul.f32 %v309, %v313
    %315 = vrot.lane.b32.xlu0 %v132, 64
    %v316 = vpop.permute.xlu0 %315
    %v319 = vsel %vm167, %v314, 0
    %321 = vmatpush.msra.mxu0 0.0
    %322 = vmatpush.msra.mxu0 0.0
    %323 = vmatpush.msra.mxu0 0.0
    %324 = vmatpush.msra.mxu0 0.0
    %325 = vmatpush.msra.mxu0 0.0
    %326 = vmatpush.msra.mxu0 0.0
    %327 = vmatpush.msra.mxu0 0.0
    %328 = vmatpush.msra.mxu0 0.0
    %329 = vmatpush.msra.mxu0 0.0
    %330 = vmatpush.msra.mxu0 0.0
    %331 = vmatpush.msra.mxu0 0.0
    %332 = vmatpush.msra.mxu0 0.0
    %333 = vmatpush.msra.mxu0 0.0
    %334 = vmatpush.msra.mxu0 0.0
    %335 = vmatpush.msra.mxu0 0.0
    %336 = vmatpush.msra.mxu0 %v316
    %337 = vmatmul.f32.gmra.mxu0 %v319
    %v338 = vpop.f32.mrf.mxu0
    %v339 = vadd.f32 0.0, %v338
    %340 = vdwg.mxu0
    %341 = vrot.lane.b32.xlu0 %v135, 112
    %v342 = vpop.permute.xlu0 %341
    %343 = vrot.lane.b32.xlu0 %v132, 80
    %v344 = vpop.permute.xlu0 %343
    %v345 = vsel %vm141, %v342, 0
    %v347 = vsel %vm141, %v344, 0
    %349 = vmatpush.xpose.msra.mxu0 0.0
    %350 = vmatpush.xpose.msra.mxu0 0.0
    %351 = vmatpush.xpose.msra.mxu0 0.0
    %352 = vmatpush.xpose.msra.mxu0 0.0
    %353 = vmatpush.xpose.msra.mxu0 0.0
    %354 = vmatpush.xpose.msra.mxu0 0.0
    %355 = vmatpush.xpose.msra.mxu0 0.0
    %356 = vmatpush.xpose.msra.mxu0 0.0
    %357 = vmatpush.xpose.msra.mxu0 0.0
    %358 = vmatpush.xpose.msra.mxu0 0.0
    %359 = vmatpush.xpose.msra.mxu0 0.0
    %360 = vmatpush.xpose.msra.mxu0 0.0
    %361 = vmatpush.xpose.msra.mxu0 0.0
    %362 = vmatpush.xpose.msra.mxu0 0.0
    %363 = vmatpush.xpose.msra.mxu0 0.0
    %364 = vmatpush.xpose.msra.mxu0 %v347
    %365 = vmatmul.f32.gmra.mxu0 %v345
    %v366 = vpop.f32.mrf.mxu0
    %v367 = vadd.f32 %v275, %v366
    %368 = vdwg.mxu0
    %v369 = vsel %vm167, %v367, -inf
    %370 = vmax.xlane.f32.xlu0 %v369
    %v371 = vpop.xlane.xlu0 %370
    %v372 = vsub.f32 %v367, %v371
    %v373 = vmul.f32 %v372, 1.442695
    %v374 = vpow.pop %v373
    %v375 = vsel %vm167, %v374, 0.0
    %376 = vadd.xlane.f32.xlu0 %v375
    %v377 = vpop.xlane.xlu0 %376
    %v378 = vrcp.pop %v377
    %v379 = vmul.f32 %v374, %v378
    %380 = vrot.lane.b32.xlu0 %v132, 48
    %v381 = vpop.permute.xlu0 %380
    %v384 = vsel %vm167, %v379, 0
    %386 = vmatpush.msra.mxu0 0.0
    %387 = vmatpush.msra.mxu0 0.0
    %388 = vmatpush.msra.mxu0 0.0
    %389 = vmatpush.msra.mxu0 0.0
    %390 = vmatpush.msra.mxu0 0.0
    %391 = vmatpush.msra.mxu0 0.0
    %392 = vmatpush.msra.mxu0 0.0
    %393 = vmatpush.msra.mxu0 0.0
    %394 = vmatpush.msra.mxu0 0.0
    %395 = vmatpush.msra.mxu0 0.0
    %396 = vmatpush.msra.mxu0 0.0
    %397 = vmatpush.msra.mxu0 0.0
    %398 = vmatpush.msra.mxu0 0.0
    %399 = vmatpush.msra.mxu0 0.0
    %400 = vmatpush.msra.mxu0 0.0
    %401 = vmatpush.msra.mxu0 %v381
    %402 = vmatmul.f32.gmra.mxu0 %v384
    %v403 = vpop.f32.mrf.mxu0
    %v404 = vadd.f32 0.0, %v403
    %405 = vdwg.mxu0
    %407 = vrot.lane.b32.xlu0 %v404, 16
    %v408 = vpop.permute.xlu0 %407
    %v410 = vsel %vm141, %v339, %v408
    %v411 = vld [vmem:[#allocation4] sm:$0xff]
    %v412 = vld [vmem:[#allocation4 + $0x8] sm:$0xff]
    %v413 = vld [vmem:[#allocation4 + $0x10] sm:$0xff]
    %v414 = vld [vmem:[#allocation4 + $0x18] sm:$0xff]
    %v415 = vld [vmem:[%s5] sm:$0x1]
    %v417 = vperm.slane %v415, 0
    %v420 = vsel %vm104, %v274, 0
    %v423 = vsel %vm104, %v410, 0
    %425 = vmatpush.msra.mxu0 0.0
    %426 = vmatpush.msra.mxu0 0.0
    %427 = vmatpush.msra.mxu0 0.0
    %428 = vmatpush.msra.mxu0 0.0
    %429 = vmatpush.msra.mxu0 0.0
    %430 = vmatpush.msra.mxu0 0.0
    %431 = vmatpush.msra.mxu0 0.0
    %432 = vmatpush.msra.mxu0 0.0
    %433 = vmatpush.msra.mxu0 0.0
    %434 = vmatpush.msra.mxu0 0.0
    %435 = vmatpush.msra.mxu0 0.0
    %436 = vmatpush.msra.mxu0 0.0
    %437 = vmatpush.msra.mxu0 %v414
    %438 = vmatpush.msra.mxu0 %v413
    %439 = vmatpush.msra.mxu0 %v412
    %440 = vmatpush.msra.mxu0 %v411
    %441 = vmatmul.f32.gmra.mxu0 %v420
    %v442 = vpop.f32.mrf.mxu0
    %v443 = vadd.f32 %v417, %v442
    %444 = vmatmul.f32.gmra.mxu0 %v423
    %v445 = vpop.f32.mrf.mxu0
    %v446 = vadd.f32 %v417, %v445
    %447 = vdwg.mxu0
    %v448 = vadd.f32 %v443, %v94
    %v449 = vadd.f32 %v446, %v95
    %v450 = vld [vmem:[%s6] sm:$0x1]
    %v451 = vld [vmem:[%s7] sm:$0x1]
    %v452 = vsel %vm104, %v448, 0.0
    %453 = vadd.xlane.f32.xlu0 %v452
    %v454 = vpop.xlane.xlu0 %453
    %v455 = vsel %vm104, %v449, 0.0
    %456 = vadd.xlane.f32.xlu0 %v455
    %v457 = vpop.xlane.xlu0 %456
    %v458 = vrcp.pop 32.0
    %v459 = vmul.f32 32.0, %v458
    %v460 = vsub.f32 1.0, %v459
    %v461 = vmul.f32 %v458, %v460
    %v462 = vadd.f32 %v458, %v461
    %vm463 = vweird.f32 %v458
    %v464 = vsel %vm463, %v458, %v462
    %v465 = vmul.f32 %v454, %v464
    %v466 = vmul.f32 %v457, %v464
    %v467 = vsub.f32 %v448, %v465
    %v468 = vsub.f32 %v449, %v466
    %v469 = vmul.f32 %v467, %v467
    %v470 = vmul.f32 %v468, %v468
    %v471 = vsel %vm104, %v469, 0.0
    %472 = vadd.xlane.f32.xlu0 %v471
    %v473 = vpop.xlane.xlu0 %472
    %v474 = vsel %vm104, %v470, 0.0
    %475 = vadd.xlane.f32.xlu0 %v474
    %v476 = vpop.xlane.xlu0 %475
    %v477 = vmul.f32 %v473, %v464
    %v478 = vmul.f32 %v476, %v464
    %v479 = vadd.f32 %v477, 1e-12
    %v480 = vadd.f32 %v478, 1e-12
    %v481 = vrsqrt.pop %v479
    %v482 = vmul.f32 %v481, %v479
    %v483 = vmul.f32 %v482, %v481
    %v484 = vmul.f32 0.5, %v483
    %v485 = vsub.f32 1.5, %v484
    %v486 = vmul.f32 %v481, %v485
    %vm487 = vweird.f32 %v479
    %vm488 = vweird.f32 %v481
    %vm489 = vmor %vm487, %vm488
    %v490 = vsel %vm489, %v481, %v486
    %v491 = vrsqrt.pop %v480
    %v492 = vmul.f32 %v491, %v480
    %v493 = vmul.f32 %v492, %v491
    %v494 = vmul.f32 0.5, %v493
    %v495 = vsub.f32 1.5, %v494
    %v496 = vmul.f32 %v491, %v495
    %vm497 = vweird.f32 %v480
    %vm498 = vweird.f32 %v491
    %vm499 = vmor %vm497, %vm498
    %v500 = vsel %vm499, %v491, %v496
    %v501 = vmul.f32 %v467, %v490
    %v502 = vmul.f32 %v468, %v500
    %v504 = vperm.slane %v450, 0
    %v506 = vmul.f32 %v501, %v504
    %v507 = vmul.f32 %v502, %v504
    %v509 = vperm.slane %v451, 0
    %v511 = vadd.f32 %v506, %v509
    %v512 = vadd.f32 %v507, %v509
    %v513 = vld [vmem:[#allocation6] sm:$0xff]
    %v514 = vld [vmem:[#allocation6 + $0x8] sm:$0xff]
    %v515 = vld [vmem:[#allocation6 + $0x10] sm:$0xff]
    %v516 = vld [vmem:[#allocation6 + $0x18] sm:$0xff]
    %v517 = vld [vmem:[%s9] sm:$0x1]
    %v519 = vperm.slane %v517, 0
    %v522 = vsel %vm104, %v511, 0
    %v525 = vsel %vm104, %v512, 0
    %527 = vmatpush.msra.mxu0 0.0
    %528 = vmatpush.msra.mxu0 0.0
    %529 = vmatpush.msra.mxu0 0.0
    %530 = vmatpush.msra.mxu0 0.0
    %531 = vmatpush.msra.mxu0 0.0
    %532 = vmatpush.msra.mxu0 0.0
    %533 = vmatpush.msra.mxu0 0.0
    %534 = vmatpush.msra.mxu0 0.0
    %535 = vmatpush.msra.mxu0 0.0
    %536 = vmatpush.msra.mxu0 0.0
    %537 = vmatpush.msra.mxu0 0.0
    %538 = vmatpush.msra.mxu0 0.0
    %539 = vmatpush.msra.mxu0 %v516
    %540 = vmatpush.msra.mxu0 %v515
    %541 = vmatpush.msra.mxu0 %v514
    %542 = vmatpush.msra.mxu0 %v513
    %543 = vmatmul.f32.gmra.mxu0 %v522
    %v544 = vpop.f32.mrf.mxu0
    %v545 = vadd.f32 %v519, %v544
    %546 = vmatmul.f32.gmra.mxu0 %v525
    %v547 = vpop.f32.mrf.mxu0
    %v548 = vadd.f32 %v519, %v547
    %549 = vdwg.mxu0
    %v550 = vmul.f32 %v545, 0.5
    %v551 = vmul.f32 %v548, 0.5
    %v552 = vmul.f32 %v545, 0.044715
    %v553 = vmul.f32 %v548, 0.044715
    %v554 = vmul.f32 %v552, %v545
    %v555 = vmul.f32 %v553, %v548
    %v556 = vmul.f32 %v554, %v545
    %v557 = vmul.f32 %v555, %v548
    %v558 = vadd.f32 %v545, %v556
    %v559 = vadd.f32 %v548, %v557
    %v560 = vmul.f32 %v558, 0.7978846
    %v561 = vmul.f32 %v559, 0.7978846
    %v562 = vtanh.pop %v560
    %v563 = vtanh.pop %v561
    %v564 = vadd.f32 %v562, 1.0
    %v565 = vadd.f32 %v563, 1.0
    %v566 = vmul.f32 %v550, %v564
    %v567 = vmul.f32 %v551, %v565
    %v568 = vld [vmem:[%s10] sm:$0xff]
    %v569 = vld [vmem:[%s10 + $0x8] sm:$0xff]
    %v570 = vld [vmem:[%s10 + $0x10] sm:$0xff]
    %v571 = vld [vmem:[%s10 + $0x18] sm:$0xff]
    %v572 = vld [vmem:[%s10 + $0x20] sm:$0xff]
    %v573 = vld [vmem:[%s10 + $0x28] sm:$0xff]
    %v574 = vld [vmem:[%s10 + $0x30] sm:$0xff]
    %v575 = vld [vmem:[%s10 + $0x38] sm:$0xff]
    %v576 = vld [vmem:[%s11] sm:$0x1]
    %v578 = vperm.slane %v576, 0
    %vm580 = vcmask 523264
    %v582 = vsel %vm580, %v566, 0
    %v585 = vsel %vm580, %v567, 0
    %587 = vmatpush.msra.mxu0 0.0
    %588 = vmatpush.msra.mxu0 0.0
    %589 = vmatpush.msra.mxu0 0.0
    %590 = vmatpush.msra.mxu0 0.0
    %591 = vmatpush.msra.mxu0 0.0
    %592 = vmatpush.msra.mxu0 0.0
    %593 = vmatpush.msra.mxu0 0.0
    %594 = vmatpush.msra.mxu0 0.0
    %595 = vmatpush.msra.mxu0 %v575
    %596 = vmatpush.msra.mxu0 %v574
    %597 = vmatpush.msra.mxu0 %v573
    %598 = vmatpush.msra.mxu0 %v572
    %599 = vmatpush.msra.mxu0 %v571
    %600 = vmatpush.msra.mxu0 %v570
    %601 = vmatpush.msra.mxu0 %v569
    %602 = vmatpush.msra.mxu0 %v568
    %603 = vmatmul.f32.gmra.mxu0 %v582
    %v604 = vpop.f32.mrf.mxu0
    %v605 = vadd.f32 %v578, %v604
    %606 = vmatmul.f32.gmra.mxu0 %v585
    %v607 = vpop.f32.mrf.mxu0
    %v608 = vadd.f32 %v578, %v607
    %609 = vdwg.mxu0
    %v610 = vadd.f32 %v605, %v511
    %v611 = vadd.f32 %v608, %v512
    %v612 = vld [vmem:[%s12] sm:$0x1]
    %v613 = vld [vmem:[%s13] sm:$0x1]
    %v614 = vsel %vm104, %v610, 0.0
    %615 = vadd.xlane.f32.xlu0 %v614
    %v616 = vpop.xlane.xlu0 %615
    %v617 = vsel %vm104, %v611, 0.0
    %618 = vadd.xlane.f32.xlu0 %v617
    %v619 = vpop.xlane.xlu0 %618
    %v620 = vmul.f32 %v616, %v464
    %v621 = vmul.f32 %v619, %v464
    %v622 = vsub.f32 %v610, %v620
    %v623 = vsub.f32 %v611, %v621
    %v624 = vmul.f32 %v622, %v622
    %v625 = vmul.f32 %v623, %v623
    %v626 = vsel %vm104, %v624, 0.0
    %627 = vadd.xlane.f32.xlu0 %v626
    %v628 = vpop.xlane.xlu0 %627
    %v629 = vsel %vm104, %v625, 0.0
    %630 = vadd.xlane.f32.xlu0 %v629
    %v631 = vpop.xlane.xlu0 %630
    %v632 = vmul.f32 %v628, %v464
    %v633 = vmul.f32 %v631, %v464
    %v634 = vadd.f32 %v632, 1e-12
    %v635 = vadd.f32 %v633, 1e-12
    %v636 = vrsqrt.pop %v634
    %v637 = vmul.f32 %v636, %v634
    %v638 = vmul.f32 %v637, %v636
    %v639 = vmul.f32 0.5, %v638
    %v640 = vsub.f32 1.5, %v639
    %v641 = vmul.f32 %v636, %v640
    %vm642 = vweird.f32 %v634
    %vm643 = vweird.f32 %v636
    %vm644 = vmor %vm642, %vm643
    %v645 = vsel %vm644, %v636, %v641
    %v646 = vrsqrt.pop %v635
    %v647 = vmul.f32 %v646, %v635
    %v648 = vmul.f32 %v647, %v646
    %v649 = vmul.f32 0.5, %v648
    %v650 = vsub.f32 1.5, %v649
    %v651 = vmul.f32 %v646, %v650
    %vm652 = vweird.f32 %v635
    %vm653 = vweird.f32 %v646
    %vm654 = vmor %vm652, %vm653
    %v655 = vsel %vm654, %v646, %v651
    %v656 = vmul.f32 %v622, %v645
    %v657 = vmul.f32 %v623, %v655
    %v659 = vperm.slane %v612, 0
    %v661 = vmul.f32 %v656, %v659
    %v662 = vmul.f32 %v657, %v659
    %v664 = vperm.slane %v613, 0
    %v666 = vadd.f32 %v661, %v664
    %v667 = vadd.f32 %v662, %v664
    %668 = vst.msk [vmem:[%s14] sm:$0xff] %vm104, %v666
    %669 = vst.msk [vmem:[%s14 + $0x8] sm:$0xff] %vm104, %v667
    // Predicated region
    $region70: #{_lambda_.5} parent=1 // pred_check
      _
    $region71: #{_lambda_.5} parent=1 // pred_check_branch
      %671 = sbr.rel (0) target = $region73
    $region72: #{_lambda_.5} parent=1 // pred_region
      _
    $region73: #{_lambda_.5} parent=1 // pred_fallthru
      _
    // Predicated region
    $region74: #{_lambda_.5} parent=1 // pred_check
      _
    $region75: #{_lambda_.5} parent=1 // pred_check_branch
      %673 = sbr.rel (0) target = $region77
    $region76: #{_lambda_.5} parent=1 // pred_region
      _
    $region77: #{_lambda_.5} parent=1 // pred_fallthru
      _
    %674 = vsyncpa [#allocation3], 1
    %675 = vsyncpa [#allocation5], 1

// kernel: _lambda_.6
$region0: #{_lambda_.6}
  #allocation0 [shape = 'u32[]', space=smem, size = 0x4, offset = 0x4, fixed_abs, tag = 'smem constant byte address 0x4 - core index']
  #allocation1 [shape = 'u32[72,128]{1,0:T(1,128)}', space=vmem, size = 0x9000, scoped, tag = 'internal scratch']
  %s0 = inlined_call_operand.vmem [shape: f32[16,32], index: 0, kind: input, shape index: {}]
  %s1 = inlined_call_operand.vmem [shape: f32[2,8], index: 1, kind: input, shape index: {}]
  %s2 = inlined_call_operand.vmem [shape: f32[32,96], index: 2, kind: input, shape index: {}]
  %s3 = inlined_call_operand.vmem [shape: f32[1,96], index: 3, kind: input, shape index: {}]
  %s4 = inlined_call_operand.hbm [shape: f32[32,32], index: 4, kind: input, shape index: {}]
  %s5 = inlined_call_operand.vmem [shape: f32[1,32], index: 5, kind: input, shape index: {}, may-alias: {5,7,11,13}]
  %s6 = inlined_call_operand.vmem [shape: f32[1,32], index: 6, kind: input, shape index: {}, may-alias: {6,12}]
  %s7 = inlined_call_operand.vmem [shape: f32[1,32], index: 7, kind: input, shape index: {}, may-alias: {5,7,11,13}]
  %s8 = inlined_call_operand.hbm [shape: f32[32,64], index: 8, kind: input, shape index: {}]
  %s9 = inlined_call_operand.vmem [shape: f32[1,64], index: 9, kind: input, shape index: {}]
  %s10 = inlined_call_operand.vmem [shape: f32[64,32], index: 10, kind: input, shape index: {}]
  %s11 = inlined_call_operand.vmem [shape: f32[1,32], index: 11, kind: input, shape index: {}, may-alias: {5,7,11,13}]
  %s12 = inlined_call_operand.vmem [shape: f32[1,32], index: 12, kind: input, shape index: {}, may-alias: {6,12}]
  %s13 = inlined_call_operand.vmem [shape: f32[1,32], index: 13, kind: input, shape index: {}, may-alias: {5,7,11,13}]
  %s14 = inlined_call_operand.vmem [shape: f32[16,32], index: 14, kind: output, shape index: {}]
  %s15 = sld [smem:[#allocation0]]
  $region74: #{_lambda_.6} parent=0
    _
  %s17 = ssub.s32 1, %s15
  %s18 = scalar_select 0, %s17, %s15
  $region1: #{_lambda_.6} parent=0
    #allocation2 [shape = 'u8[16384]{0}', space=vmem, size = 0x4000, scoped, tag = 'input window, operand 4, single buffered']
    #allocation3 [shape = 's32[1]{0}', space=sflag, size = 0x4, scoped, tag = 'scoped memory for _lambda_.6']
    #allocation4 [shape = 'u8[16384]{0}', space=vmem, size = 0x4000, scoped, tag = 'input window, operand 8, single buffered']
    #allocation5 [shape = 's32[1]{0}', space=sflag, size = 0x4, scoped, tag = 'scoped memory for _lambda_.6']
    %19 = vsyncpa [#allocation3], 0
    %20 = vsyncpa [#allocation5], 0
    // Predicated region
    $region2: #{_lambda_.6} parent=1 // pred_check
      _
    $region3: #{_lambda_.6} parent=1 // pred_check_branch
      %22 = sbr.rel (0) target = $region5
    $region4: #{_lambda_.6} parent=1 // pred_region
      _
    $region5: #{_lambda_.6} parent=1 // pred_fallthru
      _
    // Predicated region
    $region6: #{_lambda_.6} parent=1 // pred_check
      _
    $region7: #{_lambda_.6} parent=1 // pred_check_branch
      %24 = sbr.rel (0) target = $region9
    $region8: #{_lambda_.6} parent=1 // pred_region
      _
    $region9: #{_lambda_.6} parent=1 // pred_fallthru
      _
    // Predicated region
    $region10: #{_lambda_.6} parent=1 // pred_check
      _
    $region11: #{_lambda_.6} parent=1 // pred_check_branch
      %26 = sbr.rel (0) target = $region13
    $region12: #{_lambda_.6} parent=1 // pred_region
      _
    $region13: #{_lambda_.6} parent=1 // pred_fallthru
      _
    // Predicated region
    $region14: #{_lambda_.6} parent=1 // pred_check
      _
    $region15: #{_lambda_.6} parent=1 // pred_check_branch
      %28 = sbr.rel (0) target = $region17
    $region16: #{_lambda_.6} parent=1 // pred_region
      _
    $region17: #{_lambda_.6} parent=1 // pred_fallthru
      _
    // Predicated region
    $region18: #{_lambda_.6} parent=1 // pred_check
      _
    $region19: #{_lambda_.6} parent=1 // pred_check_branch
      %30 = sbr.rel (0) target = $region21
    $region20: #{_lambda_.6} parent=1 // pred_region
      %32 = vsyncadd [#allocation3], 0
      %s33 = sshll.u32 %s4, 4
      %s34 = int_to_ptr.hbm [resolvable:$true] %s33
      %s35 = sshll.u32 [#allocation2], 4
      %s36 = int_to_ptr.vmem [resolvable:$true] %s35
      %41 = dma.hbm_to_vmem [thread:$0]  %s34, 512, %s36, [#allocation3], 128, 128, 8
    $region21: #{_lambda_.6} parent=1 // pred_fallthru
      _
    // Predicated region
    $region22: #{_lambda_.6} parent=1 // pred_check
      _
    $region23: #{_lambda_.6} parent=1 // pred_check_branch
      %43 = sbr.rel (0) target = $region25
    $region24: #{_lambda_.6} parent=1 // pred_region
      _
    $region25: #{_lambda_.6} parent=1 // pred_fallthru
      _
    // Predicated region
    $region26: #{_lambda_.6} parent=1 // pred_check
      _
    $region27: #{_lambda_.6} parent=1 // pred_check_branch
      %45 = sbr.rel (0) target = $region29
    $region28: #{_lambda_.6} parent=1 // pred_region
      _
    $region29: #{_lambda_.6} parent=1 // pred_fallthru
      _
    // Predicated region
    $region30: #{_lambda_.6} parent=1 // pred_check
      _
    $region31: #{_lambda_.6} parent=1 // pred_check_branch
      %47 = sbr.rel (0) target = $region33
    $region32: #{_lambda_.6} parent=1 // pred_region
      _
    $region33: #{_lambda_.6} parent=1 // pred_fallthru
      _
    // Predicated region
    $region34: #{_lambda_.6} parent=1 // pred_check
      _
    $region35: #{_lambda_.6} parent=1 // pred_check_branch
      %49 = sbr.rel (0) target = $region37
    $region36: #{_lambda_.6} parent=1 // pred_region
      %51 = vsyncadd [#allocation5], 0
      %s52 = sshll.u32 %s8, 4
      %s53 = int_to_ptr.hbm [resolvable:$true] %s52
      %s54 = sshll.u32 [#allocation4], 4
      %s55 = int_to_ptr.vmem [resolvable:$true] %s54
      %60 = dma.hbm_to_vmem [thread:$0]  %s53, 512, %s55, [#allocation5], 128, 128, 8
    $region37: #{_lambda_.6} parent=1 // pred_fallthru
      _
    // Predicated region
    $region38: #{_lambda_.6} parent=1 // pred_check
      _
    $region39: #{_lambda_.6} parent=1 // pred_check_branch
      %62 = sbr.rel (0) target = $region41
    $region40: #{_lambda_.6} parent=1 // pred_region
      _
    $region41: #{_lambda_.6} parent=1 // pred_fallthru
      _
    // Predicated region
    $region42: #{_lambda_.6} parent=1 // pred_check
      _
    $region43: #{_lambda_.6} parent=1 // pred_check_branch
      %64 = sbr.rel (0) target = $region45
    $region44: #{_lambda_.6} parent=1 // pred_region
      _
    $region45: #{_lambda_.6} parent=1 // pred_fallthru
      _
    // Predicated region
    $region46: #{_lambda_.6} parent=1 // pred_check
      _
    $region47: #{_lambda_.6} parent=1 // pred_check_branch
      %66 = sbr.rel (0) target = $region49
    $region48: #{_lambda_.6} parent=1 // pred_region
      _
    $region49: #{_lambda_.6} parent=1 // pred_fallthru
      _
    // Predicated region
    $region50: #{_lambda_.6} parent=1 // pred_check
      _
    $region51: #{_lambda_.6} parent=1 // pred_check_branch
      %68 = sbr.rel (0) target = $region53
    $region52: #{_lambda_.6} parent=1 // pred_region
      _
    $region53: #{_lambda_.6} parent=1 // pred_fallthru
      _
    // Predicated region
    $region54: #{_lambda_.6} parent=1 // pred_check
      _
    $region55: #{_lambda_.6} parent=1 // pred_check_branch
      %70 = sbr.rel (0) target = $region57
    $region56: #{_lambda_.6} parent=1 // pred_region
      _
    $region57: #{_lambda_.6} parent=1 // pred_fallthru
      _
    // Predicated region
    $region58: #{_lambda_.6} parent=1 // pred_check
      _
    $region59: #{_lambda_.6} parent=1 // pred_check_branch
      %72 = sbr.rel (0) target = $region61
    $region60: #{_lambda_.6} parent=1 // pred_region
      %74 = dma.done [#allocation3], 512
    $region61: #{_lambda_.6} parent=1 // pred_fallthru
      _
    // Predicated region
    $region62: #{_lambda_.6} parent=1 // pred_check
      _
    $region63: #{_lambda_.6} parent=1 // pred_check_branch
      %76 = sbr.rel (0) target = $region65
    $region64: #{_lambda_.6} parent=1 // pred_region
      %78 = dma.done [#allocation5], 512
    $region65: #{_lambda_.6} parent=1 // pred_fallthru
      _
    %v79 = vld [vmem:[%s0] sm:$0xff]
    %v80 = vld [vmem:[%s0 + $0x8] sm:$0xff]
    %v81 = vld [vmem:[%s2] sm:$0xff]
    %v82 = vld [vmem:[%s2 + $0x8] sm:$0xff]
    %v83 = vld [vmem:[%s2 + $0x10] sm:$0xff]
    %v84 = vld [vmem:[%s2 + $0x18] sm:$0xff]
    %v85 = vld [vmem:[%s3] sm:$0x1]
    %v87 = vperm.slane %v85, 0
    %vm89 = vcmask 261120
    %v91 = vsel %vm89, %v79, 0
    %v94 = vsel %vm89, %v80, 0
    %96 = vmatpush.msra.mxu0 0.0
    %97 = vmatpush.msra.mxu0 0.0
    %98 = vmatpush.msra.mxu0 0.0
    %99 = vmatpush.msra.mxu0 0.0
    %100 = vmatpush.msra.mxu0 0.0
    %101 = vmatpush.msra.mxu0 0.0
    %102 = vmatpush.msra.mxu0 0.0
    %103 = vmatpush.msra.mxu0 0.0
    %104 = vmatpush.msra.mxu0 0.0
    %105 = vmatpush.msra.mxu0 0.0
    %106 = vmatpush.msra.mxu0 0.0
    %107 = vmatpush.msra.mxu0 0.0
    %108 = vmatpush.msra.mxu0 %v84
    %109 = vmatpush.msra.mxu0 %v83
    %110 = vmatpush.msra.mxu0 %v82
    %111 = vmatpush.msra.mxu0 %v81
    %112 = vmatmul.f32.gmra.mxu0 %v91
    %v113 = vpop.f32.mrf.mxu0
    %v114 = vadd.f32 %v87, %v113
    %115 = vmatmul.f32.gmra.mxu0 %v94
    %v116 = vpop.f32.mrf.mxu0
    %v117 = vadd.f32 %v87, %v116
    %118 = vdwg.mxu0
    %v119 = vmul.f32 %v114, 0.25
    %v120 = vmul.f32 %v117, 0.25
    %v121 = vld [vmem:[%s1] sm:$0x3]
    %v122 = vperm.slane %v121, 0
    %124 = vrot.lane.b32.xlu0 %v114, 96
    %v125 = vpop.permute.xlu0 %124
    %vm126 = vcmask 130048
    %v128 = vsel %vm126, %v119, 0
    %v130 = vsel %vm126, %v125, 0
    %132 = vmatpush.xpose.msra.mxu0 0.0
    %133 = vmatpush.xpose.msra.mxu0 0.0
    %134 = vmatpush.xpose.msra.mxu0 0.0
    %135 = vmatpush.xpose.msra.mxu0 0.0
    %136 = vmatpush.xpose.msra.mxu0 0.0
    %137 = vmatpush.xpose.msra.mxu0 0.0
    %138 = vmatpush.xpose.msra.mxu0 0.0
    %139 = vmatpush.xpose.msra.mxu0 0.0
    %140 = vmatpush.xpose.msra.mxu0 0.0
    %141 = vmatpush.xpose.msra.mxu0 0.0
    %142 = vmatpush.xpose.msra.mxu0 0.0
    %143 = vmatpush.xpose.msra.mxu0 0.0
    %144 = vmatpush.xpose.msra.mxu0 0.0
    %145 = vmatpush.xpose.msra.mxu0 0.0
    %146 = vmatpush.xpose.msra.mxu0 0.0
    %147 = vmatpush.xpose.msra.mxu0 %v130
    %148 = vmatmul.f32.gmra.mxu0 %v128
    %v149 = vpop.f32.mrf.mxu0
    %v150 = vadd.f32 %v122, %v149
    %151 = vdwg.mxu0
    %vm152 = vcmask 64512
    %v153 = vsel %vm152, %v150, -inf
    %154 = vmax.xlane.f32.xlu0 %v153
    %v155 = vpop.xlane.xlu0 %154
    %v156 = vsub.f32 %v150, %v155
    %v157 = vmul.f32 %v156, 1.442695
    %v158 = vpow.pop %v157
    %v159 = vsel %vm152, %v158, 0.0
    %160 = vadd.xlane.f32.xlu0 %v159
    %v161 = vpop.xlane.xlu0 %160
    %v162 = vrcp.pop %v161
    %v163 = vmul.f32 %v158, %v162
    %164 = vrot.lane.b32.xlu0 %v114, 64
    %v165 = vpop.permute.xlu0 %164
    %v168 = vsel %vm152, %v163, 0
    %170 = vmatpush.msra.mxu0 0.0
    %171 = vmatpush.msra.mxu0 0.0
    %172 = vmatpush.msra.mxu0 0.0
    %173 = vmatpush.msra.mxu0 0.0
    %174 = vmatpush.msra.mxu0 0.0
    %175 = vmatpush.msra.mxu0 0.0
    %176 = vmatpush.msra.mxu0 0.0
    %177 = vmatpush.msra.mxu0 0.0
    %178 = vmatpush.msra.mxu0 0.0
    %179 = vmatpush.msra.mxu0 0.0
    %180 = vmatpush.msra.mxu0 0.0
    %181 = vmatpush.msra.mxu0 0.0
    %182 = vmatpush.msra.mxu0 0.0
    %183 = vmatpush.msra.mxu0 0.0
    %184 = vmatpush.msra.mxu0 0.0
    %185 = vmatpush.msra.mxu0 %v165
    %186 = vmatmul.f32.gmra.mxu0 %v168
    %v187 = vpop.f32.mrf.mxu0
    %v188 = vadd.f32 0.0, %v187
    %189 = vdwg.mxu0
    %190 = vrot.lane.b32.xlu0 %v119, 112
    %v191 = vpop.permute.xlu0 %190
    %192 = vrot.lane.b32.xlu0 %v114, 80
    %v193 = vpop.permute.xlu0 %192
    %v194 = vsel %vm126, %v191, 0
    %v196 = vsel %vm126, %v193, 0
    %198 = vmatpush.xpose.msra.mxu0 0.0
    %199 = vmatpush.xpose.msra.mxu0 0.0
    %200 = vmatpush.xpose.msra.mxu0 0.0
    %201 = vmatpush.xpose.msra.mxu0 0.0
    %202 = vmatpush.xpose.msra.mxu0 0.0
    %203 = vmatpush.xpose.msra.mxu0 0.0
    %204 = vmatpush.xpose.msra.mxu0 0.0
    %205 = vmatpush.xpose.msra.mxu0 0.0
    %206 = vmatpush.xpose.msra.mxu0 0.0
    %207 = vmatpush.xpose.msra.mxu0 0.0
    %208 = vmatpush.xpose.msra.mxu0 0.0
    %209 = vmatpush.xpose.msra.mxu0 0.0
    %210 = vmatpush.xpose.msra.mxu0 0.0
    %211 = vmatpush.xpose.msra.mxu0 0.0
    %212 = vmatpush.xpose.msra.mxu0 0.0
    %213 = vmatpush.xpose.msra.mxu0 %v196
    %214 = vmatmul.f32.gmra.mxu0 %v194
    %v215 = vpop.f32.mrf.mxu0
    %v216 = vadd.f32 %v122, %v215
    %217 = vdwg.mxu0
    %v218 = vsel %vm152, %v216, -inf
    %219 = vmax.xlane.f32.xlu0 %v218
    %v220 = vpop.xlane.xlu0 %219
    %v221 = vsub.f32 %v216, %v220
    %v222 = vmul.f32 %v221, 1.442695
    %v223 = vpow.pop %v222
    %v224 = vsel %vm152, %v223, 0.0
    %225 = vadd.xlane.f32.xlu0 %v224
    %v226 = vpop.xlane.xlu0 %225
    %v227 = vrcp.pop %v226
    %v228 = vmul.f32 %v223, %v227
    %229 = vrot.lane.b32.xlu0 %v114, 48
    %v230 = vpop.permute.xlu0 %229
    %v233 = vsel %vm152, %v228, 0
    %235 = vmatpush.msra.mxu0 0.0
    %236 = vmatpush.msra.mxu0 0.0
    %237 = vmatpush.msra.mxu0 0.0
    %238 = vmatpush.msra.mxu0 0.0
    %239 = vmatpush.msra.mxu0 0.0
    %240 = vmatpush.msra.mxu0 0.0
    %241 = vmatpush.msra.mxu0 0.0
    %242 = vmatpush.msra.mxu0 0.0
    %243 = vmatpush.msra.mxu0 0.0
    %244 = vmatpush.msra.mxu0 0.0
    %245 = vmatpush.msra.mxu0 0.0
    %246 = vmatpush.msra.mxu0 0.0
    %247 = vmatpush.msra.mxu0 0.0
    %248 = vmatpush.msra.mxu0 0.0
    %249 = vmatpush.msra.mxu0 0.0
    %250 = vmatpush.msra.mxu0 %v230
    %251 = vmatmul.f32.gmra.mxu0 %v233
    %v252 = vpop.f32.mrf.mxu0
    %v253 = vadd.f32 0.0, %v252
    %254 = vdwg.mxu0
    %256 = vrot.lane.b32.xlu0 %v253, 16
    %v257 = vpop.permute.xlu0 %256
    %v259 = vsel %vm126, %v188, %v257
    %v260 = vperm.slane %v121, 1
    %262 = vrot.lane.b32.xlu0 %v117, 96
    %v263 = vpop.permute.xlu0 %262
    %v265 = vsel %vm126, %v120, 0
    %v267 = vsel %vm126, %v263, 0
    %269 = vmatpush.xpose.msra.mxu0 0.0
    %270 = vmatpush.xpose.msra.mxu0 0.0
    %271 = vmatpush.xpose.msra.mxu0 0.0
    %272 = vmatpush.xpose.msra.mxu0 0.0
    %273 = vmatpush.xpose.msra.mxu0 0.0
    %274 = vmatpush.xpose.msra.mxu0 0.0
    %275 = vmatpush.xpose.msra.mxu0 0.0
    %276 = vmatpush.xpose.msra.mxu0 0.0
    %277 = vmatpush.xpose.msra.mxu0 0.0
    %278 = vmatpush.xpose.msra.mxu0 0.0
    %279 = vmatpush.xpose.msra.mxu0 0.0
    %280 = vmatpush.xpose.msra.mxu0 0.0
    %281 = vmatpush.xpose.msra.mxu0 0.0
    %282 = vmatpush.xpose.msra.mxu0 0.0
    %283 = vmatpush.xpose.msra.mxu0 0.0
    %284 = vmatpush.xpose.msra.mxu0 %v267
    %285 = vmatmul.f32.gmra.mxu0 %v265
    %v286 = vpop.f32.mrf.mxu0
    %v287 = vadd.f32 %v260, %v286
    %288 = vdwg.mxu0
    %v289 = vsel %vm152, %v287, -inf
    %290 = vmax.xlane.f32.xlu0 %v289
    %v291 = vpop.xlane.xlu0 %290
    %v292 = vsub.f32 %v287, %v291
    %v293 = vmul.f32 %v292, 1.442695
    %v294 = vpow.pop %v293
    %v295 = vsel %vm152, %v294, 0.0
    %296 = vadd.xlane.f32.xlu0 %v295
    %v297 = vpop.xlane.xlu0 %296
    %v298 = vrcp.pop %v297
    %v299 = vmul.f32 %v294, %v298
    %300 = vrot.lane.b32.xlu0 %v117, 64
    %v301 = vpop.permute.xlu0 %300
    %v304 = vsel %vm152, %v299, 0
    %306 = vmatpush.msra.mxu0 0.0
    %307 = vmatpush.msra.mxu0 0.0
    %308 = vmatpush.msra.mxu0 0.0
    %309 = vmatpush.msra.mxu0 0.0
    %310 = vmatpush.msra.mxu0 0.0
    %311 = vmatpush.msra.mxu0 0.0
    %312 = vmatpush.msra.mxu0 0.0
    %313 = vmatpush.msra.mxu0 0.0
    %314 = vmatpush.msra.mxu0 0.0
    %315 = vmatpush.msra.mxu0 0.0
    %316 = vmatpush.msra.mxu0 0.0
    %317 = vmatpush.msra.mxu0 0.0
    %318 = vmatpush.msra.mxu0 0.0
    %319 = vmatpush.msra.mxu0 0.0
    %320 = vmatpush.msra.mxu0 0.0
    %321 = vmatpush.msra.mxu0 %v301
    %322 = vmatmul.f32.gmra.mxu0 %v304
    %v323 = vpop.f32.mrf.mxu0
    %v324 = vadd.f32 0.0, %v323
    %325 = vdwg.mxu0
    %326 = vrot.lane.b32.xlu0 %v120, 112
    %v327 = vpop.permute.xlu0 %326
    %328 = vrot.lane.b32.xlu0 %v117, 80
    %v329 = vpop.permute.xlu0 %328
    %v330 = vsel %vm126, %v327, 0
    %v332 = vsel %vm126, %v329, 0
    %334 = vmatpush.xpose.msra.mxu0 0.0
    %335 = vmatpush.xpose.msra.mxu0 0.0
    %336 = vmatpush.xpose.msra.mxu0 0.0
    %337 = vmatpush.xpose.msra.mxu0 0.0
    %338 = vmatpush.xpose.msra.mxu0 0.0
    %339 = vmatpush.xpose.msra.mxu0 0.0
    %340 = vmatpush.xpose.msra.mxu0 0.0
    %341 = vmatpush.xpose.msra.mxu0 0.0
    %342 = vmatpush.xpose.msra.mxu0 0.0
    %343 = vmatpush.xpose.msra.mxu0 0.0
    %344 = vmatpush.xpose.msra.mxu0 0.0
    %345 = vmatpush.xpose.msra.mxu0 0.0
    %346 = vmatpush.xpose.msra.mxu0 0.0
    %347 = vmatpush.xpose.msra.mxu0 0.0
    %348 = vmatpush.xpose.msra.mxu0 0.0
    %349 = vmatpush.xpose.msra.mxu0 %v332
    %350 = vmatmul.f32.gmra.mxu0 %v330
    %v351 = vpop.f32.mrf.mxu0
    %v352 = vadd.f32 %v260, %v351
    %353 = vdwg.mxu0
    %v354 = vsel %vm152, %v352, -inf
    %355 = vmax.xlane.f32.xlu0 %v354
    %v356 = vpop.xlane.xlu0 %355
    %v357 = vsub.f32 %v352, %v356
    %v358 = vmul.f32 %v357, 1.442695
    %v359 = vpow.pop %v358
    %v360 = vsel %vm152, %v359, 0.0
    %361 = vadd.xlane.f32.xlu0 %v360
    %v362 = vpop.xlane.xlu0 %361
    %v363 = vrcp.pop %v362
    %v364 = vmul.f32 %v359, %v363
    %365 = vrot.lane.b32.xlu0 %v117, 48
    %v366 = vpop.permute.xlu0 %365
    %v369 = vsel %vm152, %v364, 0
    %371 = vmatpush.msra.mxu0 0.0
    %372 = vmatpush.msra.mxu0 0.0
    %373 = vmatpush.msra.mxu0 0.0
    %374 = vmatpush.msra.mxu0 0.0
    %375 = vmatpush.msra.mxu0 0.0
    %376 = vmatpush.msra.mxu0 0.0
    %377 = vmatpush.msra.mxu0 0.0
    %378 = vmatpush.msra.mxu0 0.0
    %379 = vmatpush.msra.mxu0 0.0
    %380 = vmatpush.msra.mxu0 0.0
    %381 = vmatpush.msra.mxu0 0.0
    %382 = vmatpush.msra.mxu0 0.0
    %383 = vmatpush.msra.mxu0 0.0
    %384 = vmatpush.msra.mxu0 0.0
    %385 = vmatpush.msra.mxu0 0.0
    %386 = vmatpush.msra.mxu0 %v366
    %387 = vmatmul.f32.gmra.mxu0 %v369
    %v388 = vpop.f32.mrf.mxu0
    %v389 = vadd.f32 0.0, %v388
    %390 = vdwg.mxu0
    %392 = vrot.lane.b32.xlu0 %v389, 16
    %v393 = vpop.permute.xlu0 %392
    %v395 = vsel %vm126, %v324, %v393
    %v396 = vld [vmem:[#allocation2] sm:$0xff]
    %v397 = vld [vmem:[#allocation2 + $0x8] sm:$0xff]
    %v398 = vld [vmem:[#allocation2 + $0x10] sm:$0xff]
    %v399 = vld [vmem:[#allocation2 + $0x18] sm:$0xff]
    %v400 = vld [vmem:[%s5] sm:$0x1]
    %v402 = vperm.slane %v400, 0
    %v405 = vsel %vm89, %v259, 0
    %v408 = vsel %vm89, %v395, 0
    %410 = vmatpush.msra.mxu0 0.0
    %411 = vmatpush.msra.mxu0 0.0
    %412 = vmatpush.msra.mxu0 0.0
    %413 = vmatpush.msra.mxu0 0.0
    %414 = vmatpush.msra.mxu0 0.0
    %415 = vmatpush.msra.mxu0 0.0
    %416 = vmatpush.msra.mxu0 0.0
    %417 = vmatpush.msra.mxu0 0.0
    %418 = vmatpush.msra.mxu0 0.0
    %419 = vmatpush.msra.mxu0 0.0
    %420 = vmatpush.msra.mxu0 0.0
    %421 = vmatpush.msra.mxu0 0.0
    %422 = vmatpush.msra.mxu0 %v399
    %423 = vmatpush.msra.mxu0 %v398
    %424 = vmatpush.msra.mxu0 %v397
    %425 = vmatpush.msra.mxu0 %v396
    %426 = vmatmul.f32.gmra.mxu0 %v405
    %v427 = vpop.f32.mrf.mxu0
    %v428 = vadd.f32 %v402, %v427
    %429 = vmatmul.f32.gmra.mxu0 %v408
    %v430 = vpop.f32.mrf.mxu0
    %v431 = vadd.f32 %v402, %v430
    %432 = vdwg.mxu0
    %v433 = vadd.f32 %v428, %v79
    %v434 = vadd.f32 %v431, %v80
    %v435 = vld [vmem:[%s6] sm:$0x1]
    %v436 = vld [vmem:[%s7] sm:$0x1]
    %v437 = vsel %vm89, %v433, 0.0
    %438 = vadd.xlane.f32.xlu0 %v437
    %v439 = vpop.xlane.xlu0 %438
    %v440 = vsel %vm89, %v434, 0.0
    %441 = vadd.xlane.f32.xlu0 %v440
    %v442 = vpop.xlane.xlu0 %441
    %v443 = vrcp.pop 32.0
    %v444 = vmul.f32 32.0, %v443
    %v445 = vsub.f32 1.0, %v444
    %v446 = vmul.f32 %v443, %v445
    %v447 = vadd.f32 %v443, %v446
    %vm448 = vweird.f32 %v443
    %v449 = vsel %vm448, %v443, %v447
    %v450 = vmul.f32 %v439, %v449
    %v451 = vmul.f32 %v442, %v449
    %v452 = vsub.f32 %v433, %v450
    %v453 = vsub.f32 %v434, %v451
    %v454 = vmul.f32 %v452, %v452
    %v455 = vmul.f32 %v453, %v453
    %v456 = vsel %vm89, %v454, 0.0
    %457 = vadd.xlane.f32.xlu0 %v456
    %v458 = vpop.xlane.xlu0 %457
    %v459 = vsel %vm89, %v455, 0.0
    %460 = vadd.xlane.f32.xlu0 %v459
    %v461 = vpop.xlane.xlu0 %460
    %v462 = vmul.f32 %v458, %v449
    %v463 = vmul.f32 %v461, %v449
    %v464 = vadd.f32 %v462, 1e-12
    %v465 = vadd.f32 %v463, 1e-12
    %v466 = vrsqrt.pop %v464
    %v467 = vmul.f32 %v466, %v464
    %v468 = vmul.f32 %v467, %v466
    %v469 = vmul.f32 0.5, %v468
    %v470 = vsub.f32 1.5, %v469
    %v471 = vmul.f32 %v466, %v470
    %vm472 = vweird.f32 %v464
    %vm473 = vweird.f32 %v466
    %vm474 = vmor %vm472, %vm473
    %v475 = vsel %vm474, %v466, %v471
    %v476 = vrsqrt.pop %v465
    %v477 = vmul.f32 %v476, %v465
    %v478 = vmul.f32 %v477, %v476
    %v479 = vmul.f32 0.5, %v478
    %v480 = vsub.f32 1.5, %v479
    %v481 = vmul.f32 %v476, %v480
    %vm482 = vweird.f32 %v465
    %vm483 = vweird.f32 %v476
    %vm484 = vmor %vm482, %vm483
    %v485 = vsel %vm484, %v476, %v481
    %v486 = vmul.f32 %v452, %v475
    %v487 = vmul.f32 %v453, %v485
    %v489 = vperm.slane %v435, 0
    %v491 = vmul.f32 %v486, %v489
    %v492 = vmul.f32 %v487, %v489
    %v494 = vperm.slane %v436, 0
    %v496 = vadd.f32 %v491, %v494
    %v497 = vadd.f32 %v492, %v494
    %v498 = vld [vmem:[#allocation4] sm:$0xff]
    %v499 = vld [vmem:[#allocation4 + $0x8] sm:$0xff]
    %v500 = vld [vmem:[#allocation4 + $0x10] sm:$0xff]
    %v501 = vld [vmem:[#allocation4 + $0x18] sm:$0xff]
    %v502 = vld [vmem:[%s9] sm:$0x1]
    %v504 = vperm.slane %v502, 0
    %v507 = vsel %vm89, %v496, 0
    %v510 = vsel %vm89, %v497, 0
    %512 = vmatpush.msra.mxu0 0.0
    %513 = vmatpush.msra.mxu0 0.0
    %514 = vmatpush.msra.mxu0 0.0
    %515 = vmatpush.msra.mxu0 0.0
    %516 = vmatpush.msra.mxu0 0.0
    %517 = vmatpush.msra.mxu0 0.0
    %518 = vmatpush.msra.mxu0 0.0
    %519 = vmatpush.msra.mxu0 0.0
    %520 = vmatpush.msra.mxu0 0.0
    %521 = vmatpush.msra.mxu0 0.0
    %522 = vmatpush.msra.mxu0 0.0
    %523 = vmatpush.msra.mxu0 0.0
    %524 = vmatpush.msra.mxu0 %v501
    %525 = vmatpush.msra.mxu0 %v500
    %526 = vmatpush.msra.mxu0 %v499
    %527 = vmatpush.msra.mxu0 %v498
    %528 = vmatmul.f32.gmra.mxu0 %v507
    %v529 = vpop.f32.mrf.mxu0
    %v530 = vadd.f32 %v504, %v529
    %531 = vmatmul.f32.gmra.mxu0 %v510
    %v532 = vpop.f32.mrf.mxu0
    %v533 = vadd.f32 %v504, %v532
    %534 = vdwg.mxu0
    %v535 = vmul.f32 %v530, 0.5
    %v536 = vmul.f32 %v533, 0.5
    %v537 = vmul.f32 %v530, 0.044715
    %v538 = vmul.f32 %v533, 0.044715
    %v539 = vmul.f32 %v537, %v530
    %v540 = vmul.f32 %v538, %v533
    %v541 = vmul.f32 %v539, %v530
    %v542 = vmul.f32 %v540, %v533
    %v543 = vadd.f32 %v530, %v541
    %v544 = vadd.f32 %v533, %v542
    %v545 = vmul.f32 %v543, 0.7978846
    %v546 = vmul.f32 %v544, 0.7978846
    %v547 = vtanh.pop %v545
    %v548 = vtanh.pop %v546
    %v549 = vadd.f32 %v547, 1.0
    %v550 = vadd.f32 %v548, 1.0
    %v551 = vmul.f32 %v535, %v549
    %v552 = vmul.f32 %v536, %v550
    %v553 = vld [vmem:[%s10] sm:$0xff]
    %v554 = vld [vmem:[%s10 + $0x8] sm:$0xff]
    %v555 = vld [vmem:[%s10 + $0x10] sm:$0xff]
    %v556 = vld [vmem:[%s10 + $0x18] sm:$0xff]
    %v557 = vld [vmem:[%s10 + $0x20] sm:$0xff]
    %v558 = vld [vmem:[%s10 + $0x28] sm:$0xff]
    %v559 = vld [vmem:[%s10 + $0x30] sm:$0xff]
    %v560 = vld [vmem:[%s10 + $0x38] sm:$0xff]
    %v561 = vld [vmem:[%s11] sm:$0x1]
    %v563 = vperm.slane %v561, 0
    %vm565 = vcmask 523264
    %v567 = vsel %vm565, %v551, 0
    %v570 = vsel %vm565, %v552, 0
    %572 = vmatpush.msra.mxu0 0.0
    %573 = vmatpush.msra.mxu0 0.0
    %574 = vmatpush.msra.mxu0 0.0
    %575 = vmatpush.msra.mxu0 0.0
    %576 = vmatpush.msra.mxu0 0.0
    %577 = vmatpush.msra.mxu0 0.0
    %578 = vmatpush.msra.mxu0 0.0
    %579 = vmatpush.msra.mxu0 0.0
    %580 = vmatpush.msra.mxu0 %v560
    %581 = vmatpush.msra.mxu0 %v559
    %582 = vmatpush.msra.mxu0 %v558
    %583 = vmatpush.msra.mxu0 %v557
    %584 = vmatpush.msra.mxu0 %v556
    %585 = vmatpush.msra.mxu0 %v555
    %586 = vmatpush.msra.mxu0 %v554
    %587 = vmatpush.msra.mxu0 %v553
    %588 = vmatmul.f32.gmra.mxu0 %v567
    %v589 = vpop.f32.mrf.mxu0
    %v590 = vadd.f32 %v563, %v589
    %591 = vmatmul.f32.gmra.mxu0 %v570
    %v592 = vpop.f32.mrf.mxu0
    %v593 = vadd.f32 %v563, %v592
    %594 = vdwg.mxu0
    %v595 = vadd.f32 %v590, %v496
    %v596 = vadd.f32 %v593, %v497
    %v597 = vld [vmem:[%s12] sm:$0x1]
    %v598 = vld [vmem:[%s13] sm:$0x1]
    %v599 = vsel %vm89, %v595, 0.0
    %600 = vadd.xlane.f32.xlu0 %v599
    %v601 = vpop.xlane.xlu0 %600
    %v602 = vsel %vm89, %v596, 0.0
    %603 = vadd.xlane.f32.xlu0 %v602
    %v604 = vpop.xlane.xlu0 %603
    %v605 = vmul.f32 %v601, %v449
    %v606 = vmul.f32 %v604, %v449
    %v607 = vsub.f32 %v595, %v605
    %v608 = vsub.f32 %v596, %v606
    %v609 = vmul.f32 %v607, %v607
    %v610 = vmul.f32 %v608, %v608
    %v611 = vsel %vm89, %v609, 0.0
    %612 = vadd.xlane.f32.xlu0 %v611
    %v613 = vpop.xlane.xlu0 %612
    %v614 = vsel %vm89, %v610, 0.0
    %615 = vadd.xlane.f32.xlu0 %v614
    %v616 = vpop.xlane.xlu0 %615
    %v617 = vmul.f32 %v613, %v449
    %v618 = vmul.f32 %v616, %v449
    %v619 = vadd.f32 %v617, 1e-12
    %v620 = vadd.f32 %v618, 1e-12
    %v621 = vrsqrt.pop %v619
    %v622 = vmul.f32 %v621, %v619
    %v623 = vmul.f32 %v622, %v621
    %v624 = vmul.f32 0.5, %v623
    %v625 = vsub.f32 1.5, %v624
    %v626 = vmul.f32 %v621, %v625
    %vm627 = vweird.f32 %v619
    %vm628 = vweird.f32 %v621
    %vm629 = vmor %vm627, %vm628
    %v630 = vsel %vm629, %v621, %v626
    %v631 = vrsqrt.pop %v620
    %v632 = vmul.f32 %v631, %v620
    %v633 = vmul.f32 %v632, %v631
    %v634 = vmul.f32 0.5, %v633
    %v635 = vsub.f32 1.5, %v634
    %v636 = vmul.f32 %v631, %v635
    %vm637 = vweird.f32 %v620
    %vm638 = vweird.f32 %v631
    %vm639 = vmor %vm637, %vm638
    %v640 = vsel %vm639, %v631, %v636
    %v641 = vmul.f32 %v607, %v630
    %v642 = vmul.f32 %v608, %v640
    %v644 = vperm.slane %v597, 0
    %v646 = vmul.f32 %v641, %v644
    %v647 = vmul.f32 %v642, %v644
    %v649 = vperm.slane %v598, 0
    %v651 = vadd.f32 %v646, %v649
    %v652 = vadd.f32 %v647, %v649
    %653 = vst.msk [vmem:[%s14] sm:$0xff] %vm89, %v651
    %654 = vst.msk [vmem:[%s14 + $0x8] sm:$0xff] %vm89, %v652
    // Predicated region
    $region66: #{_lambda_.6} parent=1 // pred_check
      _
    $region67: #{_lambda_.6} parent=1 // pred_check_branch
      %656 = sbr.rel (0) target = $region69
    $region68: #{_lambda_.6} parent=1 // pred_region
      _
    $region69: #{_lambda_.6} parent=1 // pred_fallthru
      _
    // Predicated region
    $region70: #{_lambda_.6} parent=1 // pred_check
      _
    $region71: #{_lambda_.6} parent=1 // pred_check_branch
      %658 = sbr.rel (0) target = $region73
    $region72: #{_lambda_.6} parent=1 // pred_region
      _
    $region73: #{_lambda_.6} parent=1 // pred_fallthru
      _
    %659 = vsyncpa [#allocation3], 1
    %660 = vsyncpa [#allocation5], 1

</llo_original>
